<compile_context>
chip_gen: v5e
topology: v5e:2x2
jax: 0.10.0
libtpu: 0.0.40
codegen_flags: <defaults>
</compile_context>

<pallas_src>
import functools

import jax
import jax.numpy as jnp
from jax import lax
from jax.experimental import pallas as pl
from jax.experimental.pallas import tpu as pltpu

# ---- scaled-down BERT config (real BERT-base: H=768, 12 layers, 12 heads) ----
VOCAB = 50
MAX_POS = 16
TYPE_VOCAB = 2
H = 32          # hidden size (stand-in for 768)
NH = 2          # attention heads
DH = H // NH    # head dim
FF = 128        # intermediate (4*H)  -- lane-dense last axis
LAYERS = 2
EPS = 1e-12


# ----------------------------- fused encoder kernel --------------------------
def _encoder_kernel(emb_ref, eg_ref, eb_ref,
                    wqkv_ref, bqkv_ref, wo_ref, bo_ref, ln1g_ref, ln1b_ref,
                    w1_ref, bf1_ref, w2_ref, bf2_ref, ln2g_ref, ln2b_ref,
                    pw_ref, pb_ref,
                    out_ref,
                    x_scr, ctx_scr,
                    *, B, S, nh, dh):
    """One grid step = one transformer layer of one encoder.

    grid = (num_encoders, LAYERS); activations live in x_scr (VMEM) across the
    layer axis; the pooled output is written only on the last layer.
    """
    l = pl.program_id(1)
    hid = x_scr.shape[-1]

    def _ln(x, g, b):
        mu = jnp.mean(x, axis=-1, keepdims=True)
        var = jnp.mean((x - mu) ** 2, axis=-1, keepdims=True)
        return (x - mu) * lax.rsqrt(var + EPS) * g + b

    # layer 0: embedding layernorm -> initialize resident activation
    @pl.when(l == 0)
    def _():
        x_scr[...] = _ln(emb_ref[0], eg_ref[0], eb_ref[0])

    x = x_scr[...]                                            # (B*S, H)

    # fused QKV projection: one MXU op -> (B*S, 3H)
    qkv = jnp.dot(x, wqkv_ref[0, 0],
                  preferred_element_type=jnp.float32) + bqkv_ref[0, 0]

    # per-(batch, head) attention with static slices; all heads in this one
    # kernel invocation (no separate attention grid, no XLA transposes).
    scale = 1.0 / float(dh) ** 0.5
    for b in range(B):
        r0, r1 = b * S, (b + 1) * S
        for hh in range(nh):
            q = qkv[r0:r1, hh * dh:(hh + 1) * dh]             # (S, DH)
            k = qkv[r0:r1, hid + hh * dh: hid + (hh + 1) * dh]
            v = qkv[r0:r1, 2 * hid + hh * dh: 2 * hid + (hh + 1) * dh]
            s = jnp.dot(q, k.T, preferred_element_type=jnp.float32) * scale
            m = jnp.max(s, axis=-1, keepdims=True)
            p = jnp.exp(s - m)
            p = p * pl.reciprocal(jnp.sum(p, axis=-1, keepdims=True),
                                  approx=True)
            ctx_scr[r0:r1, hh * dh:(hh + 1) * dh] = jnp.dot(
                p, v, preferred_element_type=jnp.float32)

    # attention output projection + residual + LN1
    attn_out = jnp.dot(ctx_scr[...], wo_ref[0, 0],
                       preferred_element_type=jnp.float32) + bo_ref[0, 0]
    x = _ln(x + attn_out, ln1g_ref[0, 0], ln1b_ref[0, 0])

    # FFN (gelu, tanh approximation) + residual + LN2
    ff = jnp.dot(x, w1_ref[0, 0],
                 preferred_element_type=jnp.float32) + bf1_ref[0, 0]
    c = jnp.float32(0.7978845608028654)                       # sqrt(2/pi)
    ff = 0.5 * ff * (1.0 + jnp.tanh(c * (ff + 0.044715 * ff * ff * ff)))
    ff = jnp.dot(ff, w2_ref[0, 0],
                 preferred_element_type=jnp.float32) + bf2_ref[0, 0]
    x = _ln(x + ff, ln2g_ref[0, 0], ln2b_ref[0, 0])

    x_scr[...] = x

    # last layer: pooler  tanh(W @ h_CLS + b), fused into the kernel tail.
    @pl.when(l == pl.num_programs(1) - 1)
    def _():
        # select the CLS row of each sequence via a one-hot matmul (layout-safe)
        rows = lax.broadcasted_iota(jnp.int32, (B, B * S), 0)
        cols = lax.broadcasted_iota(jnp.int32, (B, B * S), 1)
        sel = (cols == rows * S).astype(jnp.float32)          # (B, B*S)
        cls = jnp.dot(sel, x, preferred_element_type=jnp.float32)   # (B, H)
        pooled = jnp.tanh(
            jnp.dot(cls, pw_ref[0], preferred_element_type=jnp.float32)
            + pb_ref[0])
        out_ref[0] = pooled


def fused_encoders(emb, p, *, B, S):
    """Run NE independent encoders (stacked on axis 0) in one pallas_call.

    emb: (NE, B*S, H) embedded+summed token/pos/type embeddings (pre-layernorm).
    p:   param dict with a leading NE axis on every leaf.
    Returns pooled outputs (NE, B, H).
    """
    NE = emb.shape[0]
    BS = B * S
    L = p["wqkv"].shape[1]
    hid = p["wqkv"].shape[2]
    h3 = p["wqkv"].shape[3]
    ff = p["w1"].shape[3]

    def e_map(e, l):   # per-encoder arrays (resident across the layer axis)
        return (e, 0, 0)

    def el_map(e, l):  # layer-stacked arrays
        return (e, l, 0, 0)

    in_specs = [
        pl.BlockSpec((1, BS, hid), e_map),        # emb
        pl.BlockSpec((1, 1, hid), e_map),         # emb_ln_g
        pl.BlockSpec((1, 1, hid), e_map),         # emb_ln_b
        pl.BlockSpec((1, 1, hid, h3), el_map),    # wqkv
        pl.BlockSpec((1, 1, 1, h3), el_map),      # bqkv
        pl.BlockSpec((1, 1, hid, hid), el_map),   # wo
        pl.BlockSpec((1, 1, 1, hid), el_map),     # bo
        pl.BlockSpec((1, 1, 1, hid), el_map),     # ln1_g
        pl.BlockSpec((1, 1, 1, hid), el_map),     # ln1_b
        pl.BlockSpec((1, 1, hid, ff), el_map),    # w1
        pl.BlockSpec((1, 1, 1, ff), el_map),      # b1
        pl.BlockSpec((1, 1, ff, hid), el_map),    # w2
        pl.BlockSpec((1, 1, 1, hid), el_map),     # b2
        pl.BlockSpec((1, 1, 1, hid), el_map),     # ln2_g
        pl.BlockSpec((1, 1, 1, hid), el_map),     # ln2_b
        pl.BlockSpec((1, hid, hid), e_map),       # pool_w
        pl.BlockSpec((1, 1, hid), e_map),         # pool_b
    ]

    kern = functools.partial(_encoder_kernel, B=B, S=S, nh=NH, dh=DH)
    return pl.pallas_call(
        kern,
        out_shape=jax.ShapeDtypeStruct((NE, B, hid), jnp.float32),
        grid=(NE, L),
        in_specs=in_specs,
        out_specs=pl.BlockSpec((1, B, hid), e_map),
        scratch_shapes=[pltpu.VMEM((BS, hid), jnp.float32),   # resident x
                        pltpu.VMEM((BS, hid), jnp.float32)],  # attention ctx
        compiler_params=pltpu.CompilerParams(
            dimension_semantics=("parallel", "arbitrary")),
    )(emb, p["emb_ln_g"], p["emb_ln_b"],
      p["wqkv"], p["bqkv"], p["wo"], p["bo"], p["ln1_g"], p["ln1_b"],
      p["w1"], p["b1"], p["w2"], p["b2"], p["ln2_g"], p["ln2_b"],
      p["pool_w"], p["pool_b"])


# ------------------------------ model (glue) ---------------------------------
def init_bert_params(key):
    keys = iter(jax.random.split(key, 16))

    def w(shape):
        return 0.02 * jax.random.normal(next(keys), shape, jnp.float32)

    return {
        "word_emb": w((VOCAB, H)),
        "pos_emb": w((MAX_POS, H)),
        "type_emb": w((TYPE_VOCAB, H)),
        "emb_ln_g": jnp.ones((1, H), jnp.float32),
        "emb_ln_b": jnp.zeros((1, H), jnp.float32),
        # layer-stacked weights; QKV fused into a single (H, 3H) projection
        "wqkv": w((LAYERS, H, 3 * H)),
        "bqkv": jnp.zeros((LAYERS, 1, 3 * H), jnp.float32),
        "wo": w((LAYERS, H, H)),
        "bo": jnp.zeros((LAYERS, 1, H), jnp.float32),
        "ln1_g": jnp.ones((LAYERS, 1, H), jnp.float32),
        "ln1_b": jnp.zeros((LAYERS, 1, H), jnp.float32),
        "w1": w((LAYERS, H, FF)),
        "b1": jnp.zeros((LAYERS, 1, FF), jnp.float32),
        "w2": w((LAYERS, FF, H)),
        "b2": jnp.zeros((LAYERS, 1, H), jnp.float32),
        "ln2_g": jnp.ones((LAYERS, 1, H), jnp.float32),
        "ln2_b": jnp.zeros((LAYERS, 1, H), jnp.float32),
        "pool_w": w((H, H)),
        "pool_b": jnp.zeros((1, H), jnp.float32),
    }


@jax.jit
def _forward_impl(stacked_params, token_ids):
    """token_ids: (NE, B, S) int32 -> pooled (NE, B, H)."""
    _, B, S = token_ids.shape

    # TODO(synk): token_type_ids and attention_mask are not modeled (segment 0
    # everywhere, no padding mask) — matches the original scaled-down kernel.
    def embed_one(p, ids):
        e = jnp.take(p["word_emb"], ids, axis=0)              # (B, S, H)
        e = e + p["pos_emb"][None, :S, :] + p["type_emb"][0][None, None, :]
        return e.reshape(B * S, H)

    emb = jax.vmap(embed_one)(stacked_params, token_ids)      # (NE, B*S, H)
    return fused_encoders(emb, stacked_params, B=B, S=S)      # (NE, B, H)


class BertQA:
    """Mirrors BERT_QA.forward: two independent encoders -> pooled outputs."""

    def __init__(self, key):
        kq, kp = jax.random.split(key)
        self.params_q = init_bert_params(kq)   # self.bert_q
        self.params_p = init_bert_params(kp)   # self.bert_p
        stack = lambda *xs: jnp.stack(xs, axis=0)
        # pre-stacked param trees so forward() does no host-side array work
        self._both = jax.tree_util.tree_map(stack, self.params_q, self.params_p)
        self._only_q = jax.tree_util.tree_map(lambda x: x[None], self.params_q)
        self._only_p = jax.tree_util.tree_map(lambda x: x[None], self.params_p)

    def forward(self, x_q, x_p):
        if (x_q is not None and x_p is not None and x_q.shape == x_p.shape):
            # both encoders in ONE jitted computation / ONE pallas_call:
            # encoder axis marked "parallel" -> runs on both TCs on v7x.
            out = _forward_impl(self._both, jnp.stack([x_q, x_p], axis=0))
            return out[0].reshape(-1, H), out[1].reshape(-1, H)
        out_q = out_p = None
        if x_q is not None:
            out_q = _forward_impl(self._only_q, x_q[None])[0].reshape(-1, H)
        if x_p is not None:
            out_p = _forward_impl(self._only_p, x_p[None])[0].reshape(-1, H)
        return out_q, out_p


if __name__ == "__main__":
    key = jax.random.PRNGKey(0)
    k_model, k_q, k_p = jax.random.split(key, 3)

    B, S = 2, 8
    x_q = jax.random.randint(k_q, (B, S), 0, VOCAB, dtype=jnp.int32)
    x_p = jax.random.randint(k_p, (B, S), 0, VOCAB, dtype=jnp.int32)

    model = BertQA(k_model)
    out_q, out_p = model.forward(x_q, x_p)
    jax.block_until_ready(out_q)
    jax.block_until_ready(out_p)

    assert out_q.shape == (B, H) and out_p.shape == (B, H)
    assert jnp.all(jnp.isfinite(out_q)) and jnp.all(jnp.isfinite(out_p))
    print("KERNEL_OK")
</pallas_src>

<mosaic_0001>
module attributes {stable_mosaic.version = 11 : i64} {
  func.func @_encoder_kernel(%arg0: i32, %arg1: i32, %arg2: memref<1x16x32xf32, #tpu.memory_space<vmem>>, %arg3: memref<1x1x32xf32, #tpu.memory_space<vmem>>, %arg4: memref<1x1x32xf32, #tpu.memory_space<vmem>>, %arg5: memref<1x1x32x96xf32, #tpu.memory_space<vmem>>, %arg6: memref<1x1x1x96xf32, #tpu.memory_space<vmem>>, %arg7: memref<1x1x32x32xf32, #tpu.memory_space<vmem>>, %arg8: memref<1x1x1x32xf32, #tpu.memory_space<vmem>>, %arg9: memref<1x1x1x32xf32, #tpu.memory_space<vmem>>, %arg10: memref<1x1x1x32xf32, #tpu.memory_space<vmem>>, %arg11: memref<1x1x32x128xf32, #tpu.memory_space<vmem>>, %arg12: memref<1x1x1x128xf32, #tpu.memory_space<vmem>>, %arg13: memref<1x1x128x32xf32, #tpu.memory_space<vmem>>, %arg14: memref<1x1x1x32xf32, #tpu.memory_space<vmem>>, %arg15: memref<1x1x1x32xf32, #tpu.memory_space<vmem>>, %arg16: memref<1x1x1x32xf32, #tpu.memory_space<vmem>>, %arg17: memref<1x32x32xf32, #tpu.memory_space<vmem>>, %arg18: memref<1x1x32xf32, #tpu.memory_space<vmem>>, %arg19: memref<1x2x32xf32, #tpu.memory_space<vmem>>, %arg20: memref<16x32xf32, #tpu.memory_space<vmem>>, %arg21: memref<16x32xf32, #tpu.memory_space<vmem>>) attributes {dimension_semantics = [#tpu.dimension_semantics<parallel>, #tpu.dimension_semantics<arbitrary>], iteration_bounds = array<i64: 2, 2>, scalar_prefetch = 0 : i64, scratch_operands = 2 : i64, tpu.core_type = #tpu.core_type<tc>, window_params = [{transform_indices = @transform_0, window_bounds = array<i64: 1, 16, 32>}, {transform_indices = @transform_1, window_bounds = array<i64: 1, 1, 32>}, {transform_indices = @transform_2, window_bounds = array<i64: 1, 1, 32>}, {transform_indices = @transform_3, window_bounds = array<i64: 1, 1, 32, 96>}, {transform_indices = @transform_4, window_bounds = array<i64: 1, 1, 1, 96>}, {transform_indices = @transform_5, window_bounds = array<i64: 1, 1, 32, 32>}, {transform_indices = @transform_6, window_bounds = array<i64: 1, 1, 1, 32>}, {transform_indices = @transform_7, window_bounds = array<i64: 1, 1, 1, 32>}, {transform_indices = @transform_8, window_bounds = array<i64: 1, 1, 1, 32>}, {transform_indices = @transform_9, window_bounds = array<i64: 1, 1, 32, 128>}, {transform_indices = @transform_10, window_bounds = array<i64: 1, 1, 1, 128>}, {transform_indices = @transform_11, window_bounds = array<i64: 1, 1, 128, 32>}, {transform_indices = @transform_12, window_bounds = array<i64: 1, 1, 1, 32>}, {transform_indices = @transform_13, window_bounds = array<i64: 1, 1, 1, 32>}, {transform_indices = @transform_14, window_bounds = array<i64: 1, 1, 1, 32>}, {transform_indices = @transform_15, window_bounds = array<i64: 1, 32, 32>}, {transform_indices = @transform_16, window_bounds = array<i64: 1, 1, 32>}, {transform_indices = @transform_17, window_bounds = array<i64: 1, 2, 32>}]} {
    %c0_i32 = arith.constant 0 : i32
    %0 = arith.cmpi eq, %arg1, %c0_i32 : i32
    %1 = arith.extui %0 : i1 to i32
    %c0_i32_0 = arith.constant 0 : i32
    %2 = arith.cmpi ne, %1, %c0_i32_0 : i32
    scf.if %2 {
      %c0_98 = arith.constant 0 : index
      %c0_99 = arith.constant 0 : index
      %c0_100 = arith.constant 0 : index
      %180 = vector.load %arg2[%c0_98, %c0_99, %c0_100] : memref<1x16x32xf32, #tpu.memory_space<vmem>>, vector<1x16x32xf32>
      %181 = vector.shape_cast %180 : vector<1x16x32xf32> to vector<16x32xf32>
      %c0_101 = arith.constant 0 : index
      %c0_102 = arith.constant 0 : index
      %c0_103 = arith.constant 0 : index
      %182 = vector.load %arg3[%c0_101, %c0_102, %c0_103] : memref<1x1x32xf32, #tpu.memory_space<vmem>>, vector<1x1x32xf32>
      %183 = vector.shape_cast %182 : vector<1x1x32xf32> to vector<1x32xf32>
      %c0_104 = arith.constant 0 : index
      %c0_105 = arith.constant 0 : index
      %c0_106 = arith.constant 0 : index
      %184 = vector.load %arg4[%c0_104, %c0_105, %c0_106] : memref<1x1x32xf32, #tpu.memory_space<vmem>>, vector<1x1x32xf32>
      %185 = vector.shape_cast %184 : vector<1x1x32xf32> to vector<1x32xf32>
      %cst_107 = arith.constant dense<0.000000e+00> : vector<16xf32>
      %186 = vector.multi_reduction <add>, %181, %cst_107 [1] : vector<16x32xf32> to vector<16xf32>
      %187 = vector.shape_cast %186 : vector<16xf32> to vector<16x1xf32>
      %cst_108 = arith.constant 3.200000e+01 : f32
      %188 = vector.broadcast %cst_108 : f32 to vector<16x1xf32>
      %189 = arith.divf %187, %188 : vector<16x1xf32>
      %190 = vector.broadcast %189 : vector<16x1xf32> to vector<16x32xf32>
      %191 = arith.subf %181, %190 : vector<16x32xf32>
      %192 = arith.mulf %191, %191 : vector<16x32xf32>
      %cst_109 = arith.constant dense<0.000000e+00> : vector<16xf32>
      %193 = vector.multi_reduction <add>, %192, %cst_109 [1] : vector<16x32xf32> to vector<16xf32>
      %194 = vector.shape_cast %193 : vector<16xf32> to vector<16x1xf32>
      %cst_110 = arith.constant 3.200000e+01 : f32
      %195 = vector.broadcast %cst_110 : f32 to vector<16x1xf32>
      %196 = arith.divf %194, %195 : vector<16x1xf32>
      %197 = vector.broadcast %189 : vector<16x1xf32> to vector<16x32xf32>
      %198 = arith.subf %181, %197 : vector<16x32xf32>
      %cst_111 = arith.constant 9.99999996E-13 : f32
      %199 = vector.broadcast %cst_111 : f32 to vector<16x1xf32>
      %200 = arith.addf %196, %199 : vector<16x1xf32>
      %201 = math.rsqrt %200 : vector<16x1xf32>
      %202 = vector.broadcast %201 : vector<16x1xf32> to vector<16x32xf32>
      %203 = arith.mulf %198, %202 : vector<16x32xf32>
      %204 = vector.broadcast %183 : vector<1x32xf32> to vector<16x32xf32>
      %205 = arith.mulf %203, %204 : vector<16x32xf32>
      %206 = vector.broadcast %185 : vector<1x32xf32> to vector<16x32xf32>
      %207 = arith.addf %205, %206 : vector<16x32xf32>
      %c0_112 = arith.constant 0 : index
      %c0_113 = arith.constant 0 : index
      %208 = vector.load %arg20[%c0_112, %c0_113] : memref<16x32xf32, #tpu.memory_space<vmem>>, vector<16x32xf32>
      tpu.vector_store %arg20[%c0_112, %c0_113], %207 {strides = array<i32>} : memref<16x32xf32, #tpu.memory_space<vmem>>, vector<16x32xf32>,
    } else {
    }
    %c0 = arith.constant 0 : index
    %c0_1 = arith.constant 0 : index
    %3 = vector.load %arg20[%c0, %c0_1] : memref<16x32xf32, #tpu.memory_space<vmem>>, vector<16x32xf32>
    %c0_2 = arith.constant 0 : index
    %c0_3 = arith.constant 0 : index
    %c0_4 = arith.constant 0 : index
    %c0_5 = arith.constant 0 : index
    %4 = vector.load %arg5[%c0_2, %c0_3, %c0_4, %c0_5] : memref<1x1x32x96xf32, #tpu.memory_space<vmem>>, vector<1x1x32x96xf32>
    %5 = vector.shape_cast %4 : vector<1x1x32x96xf32> to vector<32x96xf32>
    %cst = arith.constant dense<0.000000e+00> : vector<16x96xf32>
    %6 = tpu.matmul %3, %5, %cst {dimension_numbers = #tpu.dot_dimension_numbers<[1], [0], [0], [1], [0, 0, 1, 1], [], []>} : vector<16x32xf32>, vector<32x96xf32>, vector<16x96xf32> -> vector<16x96xf32>
    %c0_6 = arith.constant 0 : index
    %c0_7 = arith.constant 0 : index
    %c0_8 = arith.constant 0 : index
    %c0_9 = arith.constant 0 : index
    %7 = vector.load %arg6[%c0_6, %c0_7, %c0_8, %c0_9] : memref<1x1x1x96xf32, #tpu.memory_space<vmem>>, vector<1x1x1x96xf32>
    %8 = vector.shape_cast %7 : vector<1x1x1x96xf32> to vector<1x96xf32>
    %9 = vector.broadcast %8 : vector<1x96xf32> to vector<16x96xf32>
    %10 = arith.addf %6, %9 : vector<16x96xf32>
    %11 = vector.extract_strided_slice %10 {offsets = [0, 0], sizes = [8, 16], strides = [1, 1]} : vector<16x96xf32> to vector<8x16xf32>
    %12 = vector.extract_strided_slice %10 {offsets = [0, 32], sizes = [8, 16], strides = [1, 1]} : vector<16x96xf32> to vector<8x16xf32>
    %13 = vector.extract_strided_slice %10 {offsets = [0, 64], sizes = [8, 16], strides = [1, 1]} : vector<16x96xf32> to vector<8x16xf32>
    %14 = tpu.transpose %12, [1, 0] : vector<8x16xf32> -> vector<16x8xf32>
    %cst_10 = arith.constant dense<0.000000e+00> : vector<8x8xf32>
    %15 = tpu.matmul %11, %14, %cst_10 {dimension_numbers = #tpu.dot_dimension_numbers<[1], [0], [0], [1], [0, 0, 1, 1], [], []>} : vector<8x16xf32>, vector<16x8xf32>, vector<8x8xf32> -> vector<8x8xf32>
    %cst_11 = arith.constant 2.500000e-01 : f32
    %16 = vector.broadcast %cst_11 : f32 to vector<8x8xf32>
    %17 = arith.mulf %15, %16 : vector<8x8xf32>
    %cst_12 = arith.constant dense<0xFF800000> : vector<8xf32>
    %18 = vector.multi_reduction <maximumf>, %17, %cst_12 [1] : vector<8x8xf32> to vector<8xf32>
    %19 = vector.shape_cast %18 : vector<8xf32> to vector<8x1xf32>
    %20 = vector.broadcast %19 : vector<8x1xf32> to vector<8x8xf32>
    %21 = arith.subf %17, %20 : vector<8x8xf32>
    %22 = math.exp %21 : vector<8x8xf32>
    %cst_13 = arith.constant dense<0.000000e+00> : vector<8xf32>
    %23 = vector.multi_reduction <add>, %22, %cst_13 [1] : vector<8x8xf32> to vector<8xf32>
    %24 = vector.shape_cast %23 : vector<8xf32> to vector<8x1xf32>
    %25 = tpu.reciprocal %24 {approx = true} : vector<8x1xf32> -> vector<8x1xf32>
    %26 = vector.broadcast %25 : vector<8x1xf32> to vector<8x8xf32>
    %27 = arith.mulf %22, %26 : vector<8x8xf32>
    %cst_14 = arith.constant dense<0.000000e+00> : vector<8x16xf32>
    %28 = tpu.matmul %27, %13, %cst_14 {dimension_numbers = #tpu.dot_dimension_numbers<[1], [0], [0], [1], [0, 0, 1, 1], [], []>} : vector<8x8xf32>, vector<8x16xf32>, vector<8x16xf32> -> vector<8x16xf32>
    %c0_15 = arith.constant 0 : index
    %c0_16 = arith.constant 0 : index
    %29 = vector.load %arg21[%c0_15, %c0_16] : memref<16x32xf32, #tpu.memory_space<vmem>>, vector<8x16xf32>
    tpu.vector_store %arg21[%c0_15, %c0_16], %28 {strides = array<i32>} : memref<16x32xf32, #tpu.memory_space<vmem>>, vector<8x16xf32>,
    %30 = vector.extract_strided_slice %10 {offsets = [0, 16], sizes = [8, 16], strides = [1, 1]} : vector<16x96xf32> to vector<8x16xf32>
    %31 = vector.extract_strided_slice %10 {offsets = [0, 48], sizes = [8, 16], strides = [1, 1]} : vector<16x96xf32> to vector<8x16xf32>
    %32 = vector.extract_strided_slice %10 {offsets = [0, 80], sizes = [8, 16], strides = [1, 1]} : vector<16x96xf32> to vector<8x16xf32>
    %33 = tpu.transpose %31, [1, 0] : vector<8x16xf32> -> vector<16x8xf32>
    %cst_17 = arith.constant dense<0.000000e+00> : vector<8x8xf32>
    %34 = tpu.matmul %30, %33, %cst_17 {dimension_numbers = #tpu.dot_dimension_numbers<[1], [0], [0], [1], [0, 0, 1, 1], [], []>} : vector<8x16xf32>, vector<16x8xf32>, vector<8x8xf32> -> vector<8x8xf32>
    %cst_18 = arith.constant 2.500000e-01 : f32
    %35 = vector.broadcast %cst_18 : f32 to vector<8x8xf32>
    %36 = arith.mulf %34, %35 : vector<8x8xf32>
    %cst_19 = arith.constant dense<0xFF800000> : vector<8xf32>
    %37 = vector.multi_reduction <maximumf>, %36, %cst_19 [1] : vector<8x8xf32> to vector<8xf32>
    %38 = vector.shape_cast %37 : vector<8xf32> to vector<8x1xf32>
    %39 = vector.broadcast %38 : vector<8x1xf32> to vector<8x8xf32>
    %40 = arith.subf %36, %39 : vector<8x8xf32>
    %41 = math.exp %40 : vector<8x8xf32>
    %cst_20 = arith.constant dense<0.000000e+00> : vector<8xf32>
    %42 = vector.multi_reduction <add>, %41, %cst_20 [1] : vector<8x8xf32> to vector<8xf32>
    %43 = vector.shape_cast %42 : vector<8xf32> to vector<8x1xf32>
    %44 = tpu.reciprocal %43 {approx = true} : vector<8x1xf32> -> vector<8x1xf32>
    %45 = vector.broadcast %44 : vector<8x1xf32> to vector<8x8xf32>
    %46 = arith.mulf %41, %45 : vector<8x8xf32>
    %cst_21 = arith.constant dense<0.000000e+00> : vector<8x16xf32>
    %47 = tpu.matmul %46, %32, %cst_21 {dimension_numbers = #tpu.dot_dimension_numbers<[1], [0], [0], [1], [0, 0, 1, 1], [], []>} : vector<8x8xf32>, vector<8x16xf32>, vector<8x16xf32> -> vector<8x16xf32>
    %c0_22 = arith.constant 0 : index
    %c16 = arith.constant 16 : index
    %48 = vector.load %arg21[%c0_22, %c16] : memref<16x32xf32, #tpu.memory_space<vmem>>, vector<8x16xf32>
    tpu.vector_store %arg21[%c0_22, %c16], %47 {strides = array<i32>} : memref<16x32xf32, #tpu.memory_space<vmem>>, vector<8x16xf32>,
    %49 = vector.extract_strided_slice %10 {offsets = [8, 0], sizes = [8, 16], strides = [1, 1]} : vector<16x96xf32> to vector<8x16xf32>
    %50 = vector.extract_strided_slice %10 {offsets = [8, 32], sizes = [8, 16], strides = [1, 1]} : vector<16x96xf32> to vector<8x16xf32>
    %51 = vector.extract_strided_slice %10 {offsets = [8, 64], sizes = [8, 16], strides = [1, 1]} : vector<16x96xf32> to vector<8x16xf32>
    %52 = tpu.transpose %50, [1, 0] : vector<8x16xf32> -> vector<16x8xf32>
    %cst_23 = arith.constant dense<0.000000e+00> : vector<8x8xf32>
    %53 = tpu.matmul %49, %52, %cst_23 {dimension_numbers = #tpu.dot_dimension_numbers<[1], [0], [0], [1], [0, 0, 1, 1], [], []>} : vector<8x16xf32>, vector<16x8xf32>, vector<8x8xf32> -> vector<8x8xf32>
    %cst_24 = arith.constant 2.500000e-01 : f32
    %54 = vector.broadcast %cst_24 : f32 to vector<8x8xf32>
    %55 = arith.mulf %53, %54 : vector<8x8xf32>
    %cst_25 = arith.constant dense<0xFF800000> : vector<8xf32>
    %56 = vector.multi_reduction <maximumf>, %55, %cst_25 [1] : vector<8x8xf32> to vector<8xf32>
    %57 = vector.shape_cast %56 : vector<8xf32> to vector<8x1xf32>
    %58 = vector.broadcast %57 : vector<8x1xf32> to vector<8x8xf32>
    %59 = arith.subf %55, %58 : vector<8x8xf32>
    %60 = math.exp %59 : vector<8x8xf32>
    %cst_26 = arith.constant dense<0.000000e+00> : vector<8xf32>
    %61 = vector.multi_reduction <add>, %60, %cst_26 [1] : vector<8x8xf32> to vector<8xf32>
    %62 = vector.shape_cast %61 : vector<8xf32> to vector<8x1xf32>
    %63 = tpu.reciprocal %62 {approx = true} : vector<8x1xf32> -> vector<8x1xf32>
    %64 = vector.broadcast %63 : vector<8x1xf32> to vector<8x8xf32>
    %65 = arith.mulf %60, %64 : vector<8x8xf32>
    %cst_27 = arith.constant dense<0.000000e+00> : vector<8x16xf32>
    %66 = tpu.matmul %65, %51, %cst_27 {dimension_numbers = #tpu.dot_dimension_numbers<[1], [0], [0], [1], [0, 0, 1, 1], [], []>} : vector<8x8xf32>, vector<8x16xf32>, vector<8x16xf32> -> vector<8x16xf32>
    %c8 = arith.constant 8 : index
    %c0_28 = arith.constant 0 : index
    %67 = vector.load %arg21[%c8, %c0_28] : memref<16x32xf32, #tpu.memory_space<vmem>>, vector<8x16xf32>
    tpu.vector_store %arg21[%c8, %c0_28], %66 {strides = array<i32>} : memref<16x32xf32, #tpu.memory_space<vmem>>, vector<8x16xf32>,
    %68 = vector.extract_strided_slice %10 {offsets = [8, 16], sizes = [8, 16], strides = [1, 1]} : vector<16x96xf32> to vector<8x16xf32>
    %69 = vector.extract_strided_slice %10 {offsets = [8, 48], sizes = [8, 16], strides = [1, 1]} : vector<16x96xf32> to vector<8x16xf32>
    %70 = vector.extract_strided_slice %10 {offsets = [8, 80], sizes = [8, 16], strides = [1, 1]} : vector<16x96xf32> to vector<8x16xf32>
    %71 = tpu.transpose %69, [1, 0] : vector<8x16xf32> -> vector<16x8xf32>
    %cst_29 = arith.constant dense<0.000000e+00> : vector<8x8xf32>
    %72 = tpu.matmul %68, %71, %cst_29 {dimension_numbers = #tpu.dot_dimension_numbers<[1], [0], [0], [1], [0, 0, 1, 1], [], []>} : vector<8x16xf32>, vector<16x8xf32>, vector<8x8xf32> -> vector<8x8xf32>
    %cst_30 = arith.constant 2.500000e-01 : f32
    %73 = vector.broadcast %cst_30 : f32 to vector<8x8xf32>
    %74 = arith.mulf %72, %73 : vector<8x8xf32>
    %cst_31 = arith.constant dense<0xFF800000> : vector<8xf32>
    %75 = vector.multi_reduction <maximumf>, %74, %cst_31 [1] : vector<8x8xf32> to vector<8xf32>
    %76 = vector.shape_cast %75 : vector<8xf32> to vector<8x1xf32>
    %77 = vector.broadcast %76 : vector<8x1xf32> to vector<8x8xf32>
    %78 = arith.subf %74, %77 : vector<8x8xf32>
    %79 = math.exp %78 : vector<8x8xf32>
    %cst_32 = arith.constant dense<0.000000e+00> : vector<8xf32>
    %80 = vector.multi_reduction <add>, %79, %cst_32 [1] : vector<8x8xf32> to vector<8xf32>
    %81 = vector.shape_cast %80 : vector<8xf32> to vector<8x1xf32>
    %82 = tpu.reciprocal %81 {approx = true} : vector<8x1xf32> -> vector<8x1xf32>
    %83 = vector.broadcast %82 : vector<8x1xf32> to vector<8x8xf32>
    %84 = arith.mulf %79, %83 : vector<8x8xf32>
    %cst_33 = arith.constant dense<0.000000e+00> : vector<8x16xf32>
    %85 = tpu.matmul %84, %70, %cst_33 {dimension_numbers = #tpu.dot_dimension_numbers<[1], [0], [0], [1], [0, 0, 1, 1], [], []>} : vector<8x8xf32>, vector<8x16xf32>, vector<8x16xf32> -> vector<8x16xf32>
    %c8_34 = arith.constant 8 : index
    %c16_35 = arith.constant 16 : index
    %86 = vector.load %arg21[%c8_34, %c16_35] : memref<16x32xf32, #tpu.memory_space<vmem>>, vector<8x16xf32>
    tpu.vector_store %arg21[%c8_34, %c16_35], %85 {strides = array<i32>} : memref<16x32xf32, #tpu.memory_space<vmem>>, vector<8x16xf32>,
    %c0_36 = arith.constant 0 : index
    %c0_37 = arith.constant 0 : index
    %87 = vector.load %arg21[%c0_36, %c0_37] : memref<16x32xf32, #tpu.memory_space<vmem>>, vector<16x32xf32>
    %c0_38 = arith.constant 0 : index
    %c0_39 = arith.constant 0 : index
    %c0_40 = arith.constant 0 : index
    %c0_41 = arith.constant 0 : index
    %88 = vector.load %arg7[%c0_38, %c0_39, %c0_40, %c0_41] : memref<1x1x32x32xf32, #tpu.memory_space<vmem>>, vector<1x1x32x32xf32>
    %89 = vector.shape_cast %88 : vector<1x1x32x32xf32> to vector<32x32xf32>
    %cst_42 = arith.constant dense<0.000000e+00> : vector<16x32xf32>
    %90 = tpu.matmul %87, %89, %cst_42 {dimension_numbers = #tpu.dot_dimension_numbers<[1], [0], [0], [1], [0, 0, 1, 1], [], []>} : vector<16x32xf32>, vector<32x32xf32>, vector<16x32xf32> -> vector<16x32xf32>
    %c0_43 = arith.constant 0 : index
    %c0_44 = arith.constant 0 : index
    %c0_45 = arith.constant 0 : index
    %c0_46 = arith.constant 0 : index
    %91 = vector.load %arg8[%c0_43, %c0_44, %c0_45, %c0_46] : memref<1x1x1x32xf32, #tpu.memory_space<vmem>>, vector<1x1x1x32xf32>
    %92 = vector.shape_cast %91 : vector<1x1x1x32xf32> to vector<1x32xf32>
    %93 = vector.broadcast %92 : vector<1x32xf32> to vector<16x32xf32>
    %94 = arith.addf %90, %93 : vector<16x32xf32>
    %95 = arith.addf %3, %94 : vector<16x32xf32>
    %c0_47 = arith.constant 0 : index
    %c0_48 = arith.constant 0 : index
    %c0_49 = arith.constant 0 : index
    %c0_50 = arith.constant 0 : index
    %96 = vector.load %arg9[%c0_47, %c0_48, %c0_49, %c0_50] : memref<1x1x1x32xf32, #tpu.memory_space<vmem>>, vector<1x1x1x32xf32>
    %97 = vector.shape_cast %96 : vector<1x1x1x32xf32> to vector<1x32xf32>
    %c0_51 = arith.constant 0 : index
    %c0_52 = arith.constant 0 : index
    %c0_53 = arith.constant 0 : index
    %c0_54 = arith.constant 0 : index
    %98 = vector.load %arg10[%c0_51, %c0_52, %c0_53, %c0_54] : memref<1x1x1x32xf32, #tpu.memory_space<vmem>>, vector<1x1x1x32xf32>
    %99 = vector.shape_cast %98 : vector<1x1x1x32xf32> to vector<1x32xf32>
    %cst_55 = arith.constant dense<0.000000e+00> : vector<16xf32>
    %100 = vector.multi_reduction <add>, %95, %cst_55 [1] : vector<16x32xf32> to vector<16xf32>
    %101 = vector.shape_cast %100 : vector<16xf32> to vector<16x1xf32>
    %cst_56 = arith.constant 3.200000e+01 : f32
    %102 = vector.broadcast %cst_56 : f32 to vector<16x1xf32>
    %103 = arith.divf %101, %102 : vector<16x1xf32>
    %104 = vector.broadcast %103 : vector<16x1xf32> to vector<16x32xf32>
    %105 = arith.subf %95, %104 : vector<16x32xf32>
    %106 = arith.mulf %105, %105 : vector<16x32xf32>
    %cst_57 = arith.constant dense<0.000000e+00> : vector<16xf32>
    %107 = vector.multi_reduction <add>, %106, %cst_57 [1] : vector<16x32xf32> to vector<16xf32>
    %108 = vector.shape_cast %107 : vector<16xf32> to vector<16x1xf32>
    %cst_58 = arith.constant 3.200000e+01 : f32
    %109 = vector.broadcast %cst_58 : f32 to vector<16x1xf32>
    %110 = arith.divf %108, %109 : vector<16x1xf32>
    %111 = vector.broadcast %103 : vector<16x1xf32> to vector<16x32xf32>
    %112 = arith.subf %95, %111 : vector<16x32xf32>
    %cst_59 = arith.constant 9.99999996E-13 : f32
    %113 = vector.broadcast %cst_59 : f32 to vector<16x1xf32>
    %114 = arith.addf %110, %113 : vector<16x1xf32>
    %115 = math.rsqrt %114 : vector<16x1xf32>
    %116 = vector.broadcast %115 : vector<16x1xf32> to vector<16x32xf32>
    %117 = arith.mulf %112, %116 : vector<16x32xf32>
    %118 = vector.broadcast %97 : vector<1x32xf32> to vector<16x32xf32>
    %119 = arith.mulf %117, %118 : vector<16x32xf32>
    %120 = vector.broadcast %99 : vector<1x32xf32> to vector<16x32xf32>
    %121 = arith.addf %119, %120 : vector<16x32xf32>
    %c0_60 = arith.constant 0 : index
    %c0_61 = arith.constant 0 : index
    %c0_62 = arith.constant 0 : index
    %c0_63 = arith.constant 0 : index
    %122 = vector.load %arg11[%c0_60, %c0_61, %c0_62, %c0_63] : memref<1x1x32x128xf32, #tpu.memory_space<vmem>>, vector<1x1x32x128xf32>
    %123 = vector.shape_cast %122 : vector<1x1x32x128xf32> to vector<32x128xf32>
    %cst_64 = arith.constant dense<0.000000e+00> : vector<16x128xf32>
    %124 = tpu.matmul %121, %123, %cst_64 {dimension_numbers = #tpu.dot_dimension_numbers<[1], [0], [0], [1], [0, 0, 1, 1], [], []>} : vector<16x32xf32>, vector<32x128xf32>, vector<16x128xf32> -> vector<16x128xf32>
    %c0_65 = arith.constant 0 : index
    %c0_66 = arith.constant 0 : index
    %c0_67 = arith.constant 0 : index
    %c0_68 = arith.constant 0 : index
    %125 = vector.load %arg12[%c0_65, %c0_66, %c0_67, %c0_68] : memref<1x1x1x128xf32, #tpu.memory_space<vmem>>, vector<1x1x1x128xf32>
    %126 = vector.shape_cast %125 : vector<1x1x1x128xf32> to vector<1x128xf32>
    %127 = vector.broadcast %126 : vector<1x128xf32> to vector<16x128xf32>
    %128 = arith.addf %124, %127 : vector<16x128xf32>
    %cst_69 = arith.constant 5.000000e-01 : f32
    %129 = vector.broadcast %cst_69 : f32 to vector<16x128xf32>
    %130 = arith.mulf %129, %128 : vector<16x128xf32>
    %cst_70 = arith.constant 4.471500e-02 : f32
    %131 = vector.broadcast %cst_70 : f32 to vector<16x128xf32>
    %132 = arith.mulf %131, %128 : vector<16x128xf32>
    %133 = arith.mulf %132, %128 : vector<16x128xf32>
    %134 = arith.mulf %133, %128 : vector<16x128xf32>
    %135 = arith.addf %128, %134 : vector<16x128xf32>
    %cst_71 = arith.constant 0.797884583 : f32
    %136 = vector.broadcast %cst_71 : f32 to vector<16x128xf32>
    %137 = arith.mulf %136, %135 : vector<16x128xf32>
    %138 = math.tanh %137 : vector<16x128xf32>
    %cst_72 = arith.constant 1.000000e+00 : f32
    %139 = vector.broadcast %cst_72 : f32 to vector<16x128xf32>
    %140 = arith.addf %139, %138 : vector<16x128xf32>
    %141 = arith.mulf %130, %140 : vector<16x128xf32>
    %c0_73 = arith.constant 0 : index
    %c0_74 = arith.constant 0 : index
    %c0_75 = arith.constant 0 : index
    %c0_76 = arith.constant 0 : index
    %142 = vector.load %arg13[%c0_73, %c0_74, %c0_75, %c0_76] : memref<1x1x128x32xf32, #tpu.memory_space<vmem>>, vector<1x1x128x32xf32>
    %143 = vector.shape_cast %142 : vector<1x1x128x32xf32> to vector<128x32xf32>
    %cst_77 = arith.constant dense<0.000000e+00> : vector<16x32xf32>
    %144 = tpu.matmul %141, %143, %cst_77 {dimension_numbers = #tpu.dot_dimension_numbers<[1], [0], [0], [1], [0, 0, 1, 1], [], []>} : vector<16x128xf32>, vector<128x32xf32>, vector<16x32xf32> -> vector<16x32xf32>
    %c0_78 = arith.constant 0 : index
    %c0_79 = arith.constant 0 : index
    %c0_80 = arith.constant 0 : index
    %c0_81 = arith.constant 0 : index
    %145 = vector.load %arg14[%c0_78, %c0_79, %c0_80, %c0_81] : memref<1x1x1x32xf32, #tpu.memory_space<vmem>>, vector<1x1x1x32xf32>
    %146 = vector.shape_cast %145 : vector<1x1x1x32xf32> to vector<1x32xf32>
    %147 = vector.broadcast %146 : vector<1x32xf32> to vector<16x32xf32>
    %148 = arith.addf %144, %147 : vector<16x32xf32>
    %149 = arith.addf %121, %148 : vector<16x32xf32>
    %c0_82 = arith.constant 0 : index
    %c0_83 = arith.constant 0 : index
    %c0_84 = arith.constant 0 : index
    %c0_85 = arith.constant 0 : index
    %150 = vector.load %arg15[%c0_82, %c0_83, %c0_84, %c0_85] : memref<1x1x1x32xf32, #tpu.memory_space<vmem>>, vector<1x1x1x32xf32>
    %151 = vector.shape_cast %150 : vector<1x1x1x32xf32> to vector<1x32xf32>
    %c0_86 = arith.constant 0 : index
    %c0_87 = arith.constant 0 : index
    %c0_88 = arith.constant 0 : index
    %c0_89 = arith.constant 0 : index
    %152 = vector.load %arg16[%c0_86, %c0_87, %c0_88, %c0_89] : memref<1x1x1x32xf32, #tpu.memory_space<vmem>>, vector<1x1x1x32xf32>
    %153 = vector.shape_cast %152 : vector<1x1x1x32xf32> to vector<1x32xf32>
    %cst_90 = arith.constant dense<0.000000e+00> : vector<16xf32>
    %154 = vector.multi_reduction <add>, %149, %cst_90 [1] : vector<16x32xf32> to vector<16xf32>
    %155 = vector.shape_cast %154 : vector<16xf32> to vector<16x1xf32>
    %cst_91 = arith.constant 3.200000e+01 : f32
    %156 = vector.broadcast %cst_91 : f32 to vector<16x1xf32>
    %157 = arith.divf %155, %156 : vector<16x1xf32>
    %158 = vector.broadcast %157 : vector<16x1xf32> to vector<16x32xf32>
    %159 = arith.subf %149, %158 : vector<16x32xf32>
    %160 = arith.mulf %159, %159 : vector<16x32xf32>
    %cst_92 = arith.constant dense<0.000000e+00> : vector<16xf32>
    %161 = vector.multi_reduction <add>, %160, %cst_92 [1] : vector<16x32xf32> to vector<16xf32>
    %162 = vector.shape_cast %161 : vector<16xf32> to vector<16x1xf32>
    %cst_93 = arith.constant 3.200000e+01 : f32
    %163 = vector.broadcast %cst_93 : f32 to vector<16x1xf32>
    %164 = arith.divf %162, %163 : vector<16x1xf32>
    %165 = vector.broadcast %157 : vector<16x1xf32> to vector<16x32xf32>
    %166 = arith.subf %149, %165 : vector<16x32xf32>
    %cst_94 = arith.constant 9.99999996E-13 : f32
    %167 = vector.broadcast %cst_94 : f32 to vector<16x1xf32>
    %168 = arith.addf %164, %167 : vector<16x1xf32>
    %169 = math.rsqrt %168 : vector<16x1xf32>
    %170 = vector.broadcast %169 : vector<16x1xf32> to vector<16x32xf32>
    %171 = arith.mulf %166, %170 : vector<16x32xf32>
    %172 = vector.broadcast %151 : vector<1x32xf32> to vector<16x32xf32>
    %173 = arith.mulf %171, %172 : vector<16x32xf32>
    %174 = vector.broadcast %153 : vector<1x32xf32> to vector<16x32xf32>
    %175 = arith.addf %173, %174 : vector<16x32xf32>
    %c0_95 = arith.constant 0 : index
    %c0_96 = arith.constant 0 : index
    %176 = vector.load %arg20[%c0_95, %c0_96] : memref<16x32xf32, #tpu.memory_space<vmem>>, vector<16x32xf32>
    tpu.vector_store %arg20[%c0_95, %c0_96], %175 {strides = array<i32>} : memref<16x32xf32, #tpu.memory_space<vmem>>, vector<16x32xf32>,
    %c1_i32 = arith.constant 1 : i32
    %177 = arith.cmpi eq, %arg1, %c1_i32 : i32
    %178 = arith.extui %177 : i1 to i32
    %c0_i32_97 = arith.constant 0 : i32
    %179 = arith.cmpi ne, %178, %c0_i32_97 : i32
    scf.if %179 {
      %180 = tpu.iota {dimensions = array<i32: 0>} : vector<2x16xi32>
      %181 = tpu.iota {dimensions = array<i32: 1>} : vector<2x16xi32>
      %c8_i32 = arith.constant 8 : i32
      %182 = vector.broadcast %c8_i32 : i32 to vector<2x16xi32>
      %183 = arith.muli %180, %182 : vector<2x16xi32>
      %184 = arith.cmpi eq, %181, %183 : vector<2x16xi32>
      %185 = arith.extui %184 : vector<2x16xi1> to vector<2x16xi32>
      %186 = arith.sitofp %185 : vector<2x16xi32> to vector<2x16xf32>
      %cst_98 = arith.constant dense<0.000000e+00> : vector<2x32xf32>
      %187 = tpu.matmul %186, %175, %cst_98 {dimension_numbers = #tpu.dot_dimension_numbers<[1], [0], [0], [1], [0, 0, 1, 1], [], []>} : vector<2x16xf32>, vector<16x32xf32>, vector<2x32xf32> -> vector<2x32xf32>
      %c0_99 = arith.constant 0 : index
      %c0_100 = arith.constant 0 : index
      %c0_101 = arith.constant 0 : index
      %188 = vector.load %arg17[%c0_99, %c0_100, %c0_101] : memref<1x32x32xf32, #tpu.memory_space<vmem>>, vector<1x32x32xf32>
      %189 = vector.shape_cast %188 : vector<1x32x32xf32> to vector<32x32xf32>
      %cst_102 = arith.constant dense<0.000000e+00> : vector<2x32xf32>
      %190 = tpu.matmul %187, %189, %cst_102 {dimension_numbers = #tpu.dot_dimension_numbers<[1], [0], [0], [1], [0, 0, 1, 1], [], []>} : vector<2x32xf32>, vector<32x32xf32>, vector<2x32xf32> -> vector<2x32xf32>
      %c0_103 = arith.constant 0 : index
      %c0_104 = arith.constant 0 : index
      %c0_105 = arith.constant 0 : index
      %191 = vector.load %arg18[%c0_103, %c0_104, %c0_105] : memref<1x1x32xf32, #tpu.memory_space<vmem>>, vector<1x1x32xf32>
      %192 = vector.shape_cast %191 : vector<1x1x32xf32> to vector<1x32xf32>
      %193 = vector.broadcast %192 : vector<1x32xf32> to vector<2x32xf32>
      %194 = arith.addf %190, %193 : vector<2x32xf32>
      %195 = math.tanh %194 : vector<2x32xf32>
      %c0_106 = arith.constant 0 : index
      %c0_107 = arith.constant 0 : index
      %c0_108 = arith.constant 0 : index
      %196 = vector.load %arg19[%c0_106, %c0_107, %c0_108] : memref<1x2x32xf32, #tpu.memory_space<vmem>>, vector<1x2x32xf32>
      %197 = vector.shape_cast %196 : vector<1x2x32xf32> to vector<2x32xf32>
      %198 = vector.shape_cast %195 : vector<2x32xf32> to vector<1x2x32xf32>
      tpu.vector_store %arg19[%c0_106, %c0_107, %c0_108], %198 {strides = array<i32>} : memref<1x2x32xf32, #tpu.memory_space<vmem>>, vector<1x2x32xf32>,
    } else {
    }
    return
  }
  func.func @transform_0(%arg0: i32, %arg1: i32) -> (i32, i32, i32) {
    %c0_i32 = arith.constant 0 : i32
    %c0_i32_0 = arith.constant 0 : i32
    %c0_i32_1 = arith.constant 0 : i32
    return %arg0, %c0_i32, %c0_i32_0 : i32, i32, i32
  }
  func.func @transform_1(%arg0: i32, %arg1: i32) -> (i32, i32, i32) {
    %c0_i32 = arith.constant 0 : i32
    %c0_i32_0 = arith.constant 0 : i32
    %c0_i32_1 = arith.constant 0 : i32
    return %arg0, %c0_i32, %c0_i32_0 : i32, i32, i32
  }
  func.func @transform_2(%arg0: i32, %arg1: i32) -> (i32, i32, i32) {
    %c0_i32 = arith.constant 0 : i32
    %c0_i32_0 = arith.constant 0 : i32
    %c0_i32_1 = arith.constant 0 : i32
    return %arg0, %c0_i32, %c0_i32_0 : i32, i32, i32
  }
  func.func @transform_3(%arg0: i32, %arg1: i32) -> (i32, i32, i32, i32) {
    %c0_i32 = arith.constant 0 : i32
    %c0_i32_0 = arith.constant 0 : i32
    %c0_i32_1 = arith.constant 0 : i32
    return %arg0, %arg1, %c0_i32, %c0_i32_0 : i32, i32, i32, i32
  }
  func.func @transform_4(%arg0: i32, %arg1: i32) -> (i32, i32, i32, i32) {
    %c0_i32 = arith.constant 0 : i32
    %c0_i32_0 = arith.constant 0 : i32
    %c0_i32_1 = arith.constant 0 : i32
    return %arg0, %arg1, %c0_i32, %c0_i32_0 : i32, i32, i32, i32
  }
  func.func @transform_5(%arg0: i32, %arg1: i32) -> (i32, i32, i32, i32) {
    %c0_i32 = arith.constant 0 : i32
    %c0_i32_0 = arith.constant 0 : i32
    %c0_i32_1 = arith.constant 0 : i32
    return %arg0, %arg1, %c0_i32, %c0_i32_0 : i32, i32, i32, i32
  }
  func.func @transform_6(%arg0: i32, %arg1: i32) -> (i32, i32, i32, i32) {
    %c0_i32 = arith.constant 0 : i32
    %c0_i32_0 = arith.constant 0 : i32
    %c0_i32_1 = arith.constant 0 : i32
    return %arg0, %arg1, %c0_i32, %c0_i32_0 : i32, i32, i32, i32
  }
  func.func @transform_7(%arg0: i32, %arg1: i32) -> (i32, i32, i32, i32) {
    %c0_i32 = arith.constant 0 : i32
    %c0_i32_0 = arith.constant 0 : i32
    %c0_i32_1 = arith.constant 0 : i32
    return %arg0, %arg1, %c0_i32, %c0_i32_0 : i32, i32, i32, i32
  }
  func.func @transform_8(%arg0: i32, %arg1: i32) -> (i32, i32, i32, i32) {
    %c0_i32 = arith.constant 0 : i32
    %c0_i32_0 = arith.constant 0 : i32
    %c0_i32_1 = arith.constant 0 : i32
    return %arg0, %arg1, %c0_i32, %c0_i32_0 : i32, i32, i32, i32
  }
  func.func @transform_9(%arg0: i32, %arg1: i32) -> (i32, i32, i32, i32) {
    %c0_i32 = arith.constant 0 : i32
    %c0_i32_0 = arith.constant 0 : i32
    %c0_i32_1 = arith.constant 0 : i32
    return %arg0, %arg1, %c0_i32, %c0_i32_0 : i32, i32, i32, i32
  }
  func.func @transform_10(%arg0: i32, %arg1: i32) -> (i32, i32, i32, i32) {
    %c0_i32 = arith.constant 0 : i32
    %c0_i32_0 = arith.constant 0 : i32
    %c0_i32_1 = arith.constant 0 : i32
    return %arg0, %arg1, %c0_i32, %c0_i32_0 : i32, i32, i32, i32
  }
  func.func @transform_11(%arg0: i32, %arg1: i32) -> (i32, i32, i32, i32) {
    %c0_i32 = arith.constant 0 : i32
    %c0_i32_0 = arith.constant 0 : i32
    %c0_i32_1 = arith.constant 0 : i32
    return %arg0, %arg1, %c0_i32, %c0_i32_0 : i32, i32, i32, i32
  }
  func.func @transform_12(%arg0: i32, %arg1: i32) -> (i32, i32, i32, i32) {
    %c0_i32 = arith.constant 0 : i32
    %c0_i32_0 = arith.constant 0 : i32
    %c0_i32_1 = arith.constant 0 : i32
    return %arg0, %arg1, %c0_i32, %c0_i32_0 : i32, i32, i32, i32
  }
  func.func @transform_13(%arg0: i32, %arg1: i32) -> (i32, i32, i32, i32) {
    %c0_i32 = arith.constant 0 : i32
    %c0_i32_0 = arith.constant 0 : i32
    %c0_i32_1 = arith.constant 0 : i32
    return %arg0, %arg1, %c0_i32, %c0_i32_0 : i32, i32, i32, i32
  }
  func.func @transform_14(%arg0: i32, %arg1: i32) -> (i32, i32, i32, i32) {
    %c0_i32 = arith.constant 0 : i32
    %c0_i32_0 = arith.constant 0 : i32
    %c0_i32_1 = arith.constant 0 : i32
    return %arg0, %arg1, %c0_i32, %c0_i32_0 : i32, i32, i32, i32
  }
  func.func @transform_15(%arg0: i32, %arg1: i32) -> (i32, i32, i32) {
    %c0_i32 = arith.constant 0 : i32
    %c0_i32_0 = arith.constant 0 : i32
    %c0_i32_1 = arith.constant 0 : i32
    return %arg0, %c0_i32, %c0_i32_0 : i32, i32, i32
  }
  func.func @transform_16(%arg0: i32, %arg1: i32) -> (i32, i32, i32) {
    %c0_i32 = arith.constant 0 : i32
    %c0_i32_0 = arith.constant 0 : i32
    %c0_i32_1 = arith.constant 0 : i32
    return %arg0, %c0_i32, %c0_i32_0 : i32, i32, i32
  }
  func.func @transform_17(%arg0: i32, %arg1: i32) -> (i32, i32, i32) {
    %c0_i32 = arith.constant 0 : i32
    %c0_i32_0 = arith.constant 0 : i32
    %c0_i32_1 = arith.constant 0 : i32
    return %arg0, %c0_i32, %c0_i32_0 : i32, i32, i32
  }
}

</mosaic_0001>

<llo_original>
// kernel: _forward_impl.1
$region0: #{_forward_impl.1}
  #allocation0 [shape = 'u32[]', space=smem, size = 0x4, offset = 0x4, fixed_abs, tag = 'smem constant byte address 0x4 - core index']
  #allocation1 [shape = 'u32[72,128]{1,0:T(1,128)}', space=vmem, size = 0x9000, scoped, tag = 'internal scratch']
  #allocation2 [shape = 'f32[16,32]{1,0:T(8,128)}', space=vmem, size = 0x2000, scoped, tag = 'scratch operand']
  #allocation3 [shape = 'f32[16,32]{1,0:T(8,128)}', space=vmem, size = 0x2000, scoped, tag = 'scratch operand']
  %s0 = inlined_call_operand.vmem [shape: f32[2,16,32], index: 0, kind: input, shape index: {}]
  %s1 = inlined_call_operand.vmem [shape: f32[2,1,32], index: 1, kind: input, shape index: {}]
  %s2 = inlined_call_operand.vmem [shape: f32[2,1,32], index: 2, kind: input, shape index: {}]
  %s3 = inlined_call_operand.vmem [shape: f32[2,2,32,96], index: 3, kind: input, shape index: {}]
  %s4 = inlined_call_operand.vmem [shape: f32[2,2,1,96], index: 4, kind: input, shape index: {}]
  %s5 = inlined_call_operand.vmem [shape: f32[2,2,32,32], index: 5, kind: input, shape index: {}]
  %s6 = inlined_call_operand.vmem [shape: f32[2,2,1,32], index: 6, kind: input, shape index: {}]
  %s7 = inlined_call_operand.vmem [shape: f32[2,2,1,32], index: 7, kind: input, shape index: {}]
  %s8 = inlined_call_operand.vmem [shape: f32[2,2,1,32], index: 8, kind: input, shape index: {}]
  %s9 = inlined_call_operand.vmem [shape: f32[2,2,32,128], index: 9, kind: input, shape index: {}]
  %s10 = inlined_call_operand.vmem [shape: f32[2,2,1,128], index: 10, kind: input, shape index: {}]
  %s11 = inlined_call_operand.vmem [shape: f32[2,2,128,32], index: 11, kind: input, shape index: {}]
  %s12 = inlined_call_operand.vmem [shape: f32[2,2,1,32], index: 12, kind: input, shape index: {}]
  %s13 = inlined_call_operand.vmem [shape: f32[2,2,1,32], index: 13, kind: input, shape index: {}]
  %s14 = inlined_call_operand.vmem [shape: f32[2,2,1,32], index: 14, kind: input, shape index: {}]
  %s15 = inlined_call_operand.vmem [shape: f32[2,32,32], index: 15, kind: input, shape index: {}]
  %s16 = inlined_call_operand.vmem [shape: f32[2,1,32], index: 16, kind: input, shape index: {}]
  %s17 = inlined_call_operand.hbm [shape: f32[2,2,32], index: 17, kind: output, shape index: {}]
  %s18 = sld [smem:[#allocation0]]
  $region109: #{_forward_impl.1} parent=0
    _
  %s20 = ssub.s32 1, %s18
  %s21 = scalar_select 0, %s20, %s18
  $region1: #{_forward_impl.1} parent=0
    #allocation4 [shape = 'u8[2048]{0}', space=vmem, size = 0x800, scoped, tag = 'output window, operand 0']
    #allocation5 [shape = 's32[2]{0}', space=sflag, size = 0x8, scoped, tag = 'scoped memory for _forward_impl.1']
    %22 = vsyncpa [#allocation5], 0
    %s23 = scalar_lea.sflag [#allocation5], 1
    %24 = vsyncpa %s23, 0
    loop: start=0, step=1, limit=6
    $region2: #{_forward_impl.1} parent=1 // loop_pre_header
      _
    $region3: #{_forward_impl.1} parent=1 // loop_header
      %s26 = sphi 0, %s30
      %p27 = scmp.ge.s32.totalorder %s26, 6
      %s33 = sphi 0, %s45
      %s34 = sphi 0, %s41
      %s35 = sphi 0, %s33
      %s36 = sphi 0, %s34
      %s37 = sphi 0, %s35
      %s38 = sphi 0, %s36
      %s48 = sphi 0, %s50
      %s51 = sphi 0, %s48
      %s52 = sphi 0, %s51
      %s68 = sphi 0, %s52
      %s74 = sphi 0, %s76
      %s77 = sphi 0, %s74
      %s78 = sphi 0, %s77
      %s94 = sphi 0, %s78
      %s100 = sphi 0, %s102
      %s103 = sphi 0, %s100
      %s104 = sphi 0, %s103
      %s120 = sphi 0, %s104
      %s128 = sphi 0, %s130
      %s131 = sphi 0, %s128
      %s132 = sphi 0, %s131
      %s148 = sphi 0, %s132
      %s156 = sphi 0, %s158
      %s159 = sphi 0, %s156
      %s160 = sphi 0, %s159
      %s176 = sphi 0, %s160
      %s184 = sphi 0, %s186
      %s187 = sphi 0, %s184
      %s188 = sphi 0, %s187
      %s204 = sphi 0, %s188
      %s212 = sphi 0, %s214
      %s215 = sphi 0, %s212
      %s216 = sphi 0, %s215
      %s232 = sphi 0, %s216
      %s240 = sphi 0, %s242
      %s243 = sphi 0, %s240
      %s244 = sphi 0, %s243
      %s260 = sphi 0, %s244
      %s268 = sphi 0, %s270
      %s271 = sphi 0, %s268
      %s272 = sphi 0, %s271
      %s288 = sphi 0, %s272
      %s296 = sphi 0, %s298
      %s299 = sphi 0, %s296
      %s300 = sphi 0, %s299
      %s316 = sphi 0, %s300
      %s324 = sphi 0, %s326
      %s327 = sphi 0, %s324
      %s328 = sphi 0, %s327
      %s344 = sphi 0, %s328
      %s352 = sphi 0, %s354
      %s355 = sphi 0, %s352
      %s356 = sphi 0, %s355
      %s372 = sphi 0, %s356
      %s380 = sphi 0, %s382
      %s383 = sphi 0, %s380
      %s384 = sphi 0, %s383
      %s400 = sphi 0, %s384
      %s408 = sphi 0, %s410
      %s411 = sphi 0, %s408
      %s412 = sphi 0, %s411
      %s428 = sphi 0, %s412
      %s436 = sphi 0, %s438
      %s439 = sphi 0, %s436
      %s440 = sphi 0, %s439
      %s456 = sphi 0, %s440
      %s462 = sphi 0, %s464
      %s465 = sphi 0, %s462
      %s466 = sphi 0, %s465
      %s482 = sphi 0, %s466
      %s488 = sphi 0, %s490
      %s491 = sphi 0, %s488
      %s492 = sphi 0, %s491
      %s508 = sphi 0, %s492
      %s514 = sphi 0, %s516
      %s517 = sphi 0, %s514
      %s518 = sphi 0, %s517
      %s534 = sphi 0, %s518
    $region4: #{_forward_impl.1} parent=1 // loop_header_branch
      %29 = sbr.rel (%p27) target = $region8
    $region5: #{_forward_impl.1} parent=1 // loop_body
      %s31 = ssub.s32 %s26, 1
      %s32 = ssub.s32 %s26, 2
      %s39 = sadd.s32 1, %s34
      %p40 = scmp.ge.s32.totalorder %s39, 2
      %s41 = scalar_select %p40, 0, %s39
      %s42 = sadd.s32 1, %s33
      %s43 = scalar_select %p40, %s42, %s33
      %p44 = scmp.ge.s32.totalorder %s43, 2
      %s45 = scalar_select %p44, 0, %s43
      %s46 = ssub.s32 %s33, %s45
      %p47 = scmp.eq.s32.totalorder %s46, 0
      %s49 = sadd.s32 %s48, 1
      %s50 = scalar_select %p47, %s48, %s49
      %p53 = pneg %p47
      %p54 = scmp.eq.s32.totalorder %s26, 3
      %p55 = por %p53, %p54
      %p56 = scmp.ne.s32.totalorder %s48, %s51
      %p57 = scmp.eq.s32.totalorder %s26, 0
      %p58 = por %p56, %p57
      %p59 = scmp.ne.s32.totalorder %s48, %s51
      %p60 = scmp.eq.s32.totalorder %s31, 3
      %p61 = por %p59, %p60
      %p62 = scmp.ne.s32.totalorder %s51, %s52
      %p63 = scmp.eq.s32.totalorder %s31, 0
      %p64 = por %p62, %p63
      %p65 = scmp.ne.s32.totalorder %s51, %s52
      %p66 = scmp.eq.s32.totalorder %s32, 3
      %p67 = por %p65, %p66
      %p69 = scmp.ne.s32.totalorder %s52, %s68
      %p70 = scmp.eq.s32.totalorder %s32, 0
      %p71 = por %p69, %p70
      %s72 = ssub.s32 %s33, %s45
      %p73 = scmp.eq.s32.totalorder %s72, 0
      %s75 = sadd.s32 %s74, 1
      %s76 = scalar_select %p73, %s74, %s75
      %p79 = pneg %p73
      %p80 = scmp.eq.s32.totalorder %s26, 3
      %p81 = por %p79, %p80
      %p82 = scmp.ne.s32.totalorder %s74, %s77
      %p83 = scmp.eq.s32.totalorder %s26, 0
      %p84 = por %p82, %p83
      %p85 = scmp.ne.s32.totalorder %s74, %s77
      %p86 = scmp.eq.s32.totalorder %s31, 3
      %p87 = por %p85, %p86
      %p88 = scmp.ne.s32.totalorder %s77, %s78
      %p89 = scmp.eq.s32.totalorder %s31, 0
      %p90 = por %p88, %p89
      %p91 = scmp.ne.s32.totalorder %s77, %s78
      %p92 = scmp.eq.s32.totalorder %s32, 3
      %p93 = por %p91, %p92
      %p95 = scmp.ne.s32.totalorder %s78, %s94
      %p96 = scmp.eq.s32.totalorder %s32, 0
      %p97 = por %p95, %p96
      %s98 = ssub.s32 %s33, %s45
      %p99 = scmp.eq.s32.totalorder %s98, 0
      %s101 = sadd.s32 %s100, 1
      %s102 = scalar_select %p99, %s100, %s101
      %p105 = pneg %p99
      %p106 = scmp.eq.s32.totalorder %s26, 3
      %p107 = por %p105, %p106
      %p108 = scmp.ne.s32.totalorder %s100, %s103
      %p109 = scmp.eq.s32.totalorder %s26, 0
      %p110 = por %p108, %p109
      %p111 = scmp.ne.s32.totalorder %s100, %s103
      %p112 = scmp.eq.s32.totalorder %s31, 3
      %p113 = por %p111, %p112
      %p114 = scmp.ne.s32.totalorder %s103, %s104
      %p115 = scmp.eq.s32.totalorder %s31, 0
      %p116 = por %p114, %p115
      %p117 = scmp.ne.s32.totalorder %s103, %s104
      %p118 = scmp.eq.s32.totalorder %s32, 3
      %p119 = por %p117, %p118
      %p121 = scmp.ne.s32.totalorder %s104, %s120
      %p122 = scmp.eq.s32.totalorder %s32, 0
      %p123 = por %p121, %p122
      %s124 = ssub.s32 %s33, %s45
      %s125 = ssub.s32 %s34, %s41
      %s126 = sor.u32 %s124, %s125
      %p127 = scmp.eq.s32.totalorder %s126, 0
      %s129 = sadd.s32 %s128, 1
      %s130 = scalar_select %p127, %s128, %s129
      %p133 = pneg %p127
      %p134 = scmp.eq.s32.totalorder %s26, 3
      %p135 = por %p133, %p134
      %p136 = scmp.ne.s32.totalorder %s128, %s131
      %p137 = scmp.eq.s32.totalorder %s26, 0
      %p138 = por %p136, %p137
      %p139 = scmp.ne.s32.totalorder %s128, %s131
      %p140 = scmp.eq.s32.totalorder %s31, 3
      %p141 = por %p139, %p140
      %p142 = scmp.ne.s32.totalorder %s131, %s132
      %p143 = scmp.eq.s32.totalorder %s31, 0
      %p144 = por %p142, %p143
      %p145 = scmp.ne.s32.totalorder %s131, %s132
      %p146 = scmp.eq.s32.totalorder %s32, 3
      %p147 = por %p145, %p146
      %p149 = scmp.ne.s32.totalorder %s132, %s148
      %p150 = scmp.eq.s32.totalorder %s32, 0
      %p151 = por %p149, %p150
      %s152 = ssub.s32 %s33, %s45
      %s153 = ssub.s32 %s34, %s41
      %s154 = sor.u32 %s152, %s153
      %p155 = scmp.eq.s32.totalorder %s154, 0
      %s157 = sadd.s32 %s156, 1
      %s158 = scalar_select %p155, %s156, %s157
      %p161 = pneg %p155
      %p162 = scmp.eq.s32.totalorder %s26, 3
      %p163 = por %p161, %p162
      %p164 = scmp.ne.s32.totalorder %s156, %s159
      %p165 = scmp.eq.s32.totalorder %s26, 0
      %p166 = por %p164, %p165
      %p167 = scmp.ne.s32.totalorder %s156, %s159
      %p168 = scmp.eq.s32.totalorder %s31, 3
      %p169 = por %p167, %p168
      %p170 = scmp.ne.s32.totalorder %s159, %s160
      %p171 = scmp.eq.s32.totalorder %s31, 0
      %p172 = por %p170, %p171
      %p173 = scmp.ne.s32.totalorder %s159, %s160
      %p174 = scmp.eq.s32.totalorder %s32, 3
      %p175 = por %p173, %p174
      %p177 = scmp.ne.s32.totalorder %s160, %s176
      %p178 = scmp.eq.s32.totalorder %s32, 0
      %p179 = por %p177, %p178
      %s180 = ssub.s32 %s33, %s45
      %s181 = ssub.s32 %s34, %s41
      %s182 = sor.u32 %s180, %s181
      %p183 = scmp.eq.s32.totalorder %s182, 0
      %s185 = sadd.s32 %s184, 1
      %s186 = scalar_select %p183, %s184, %s185
      %p189 = pneg %p183
      %p190 = scmp.eq.s32.totalorder %s26, 3
      %p191 = por %p189, %p190
      %p192 = scmp.ne.s32.totalorder %s184, %s187
      %p193 = scmp.eq.s32.totalorder %s26, 0
      %p194 = por %p192, %p193
      %p195 = scmp.ne.s32.totalorder %s184, %s187
      %p196 = scmp.eq.s32.totalorder %s31, 3
      %p197 = por %p195, %p196
      %p198 = scmp.ne.s32.totalorder %s187, %s188
      %p199 = scmp.eq.s32.totalorder %s31, 0
      %p200 = por %p198, %p199
      %p201 = scmp.ne.s32.totalorder %s187, %s188
      %p202 = scmp.eq.s32.totalorder %s32, 3
      %p203 = por %p201, %p202
      %p205 = scmp.ne.s32.totalorder %s188, %s204
      %p206 = scmp.eq.s32.totalorder %s32, 0
      %p207 = por %p205, %p206
      %s208 = ssub.s32 %s33, %s45
      %s209 = ssub.s32 %s34, %s41
      %s210 = sor.u32 %s208, %s209
      %p211 = scmp.eq.s32.totalorder %s210, 0
      %s213 = sadd.s32 %s212, 1
      %s214 = scalar_select %p211, %s212, %s213
      %p217 = pneg %p211
      %p218 = scmp.eq.s32.totalorder %s26, 3
      %p219 = por %p217, %p218
      %p220 = scmp.ne.s32.totalorder %s212, %s215
      %p221 = scmp.eq.s32.totalorder %s26, 0
      %p222 = por %p220, %p221
      %p223 = scmp.ne.s32.totalorder %s212, %s215
      %p224 = scmp.eq.s32.totalorder %s31, 3
      %p225 = por %p223, %p224
      %p226 = scmp.ne.s32.totalorder %s215, %s216
      %p227 = scmp.eq.s32.totalorder %s31, 0
      %p228 = por %p226, %p227
      %p229 = scmp.ne.s32.totalorder %s215, %s216
      %p230 = scmp.eq.s32.totalorder %s32, 3
      %p231 = por %p229, %p230
      %p233 = scmp.ne.s32.totalorder %s216, %s232
      %p234 = scmp.eq.s32.totalorder %s32, 0
      %p235 = por %p233, %p234
      %s236 = ssub.s32 %s33, %s45
      %s237 = ssub.s32 %s34, %s41
      %s238 = sor.u32 %s236, %s237
      %p239 = scmp.eq.s32.totalorder %s238, 0
      %s241 = sadd.s32 %s240, 1
      %s242 = scalar_select %p239, %s240, %s241
      %p245 = pneg %p239
      %p246 = scmp.eq.s32.totalorder %s26, 3
      %p247 = por %p245, %p246
      %p248 = scmp.ne.s32.totalorder %s240, %s243
      %p249 = scmp.eq.s32.totalorder %s26, 0
      %p250 = por %p248, %p249
      %p251 = scmp.ne.s32.totalorder %s240, %s243
      %p252 = scmp.eq.s32.totalorder %s31, 3
      %p253 = por %p251, %p252
      %p254 = scmp.ne.s32.totalorder %s243, %s244
      %p255 = scmp.eq.s32.totalorder %s31, 0
      %p256 = por %p254, %p255
      %p257 = scmp.ne.s32.totalorder %s243, %s244
      %p258 = scmp.eq.s32.totalorder %s32, 3
      %p259 = por %p257, %p258
      %p261 = scmp.ne.s32.totalorder %s244, %s260
      %p262 = scmp.eq.s32.totalorder %s32, 0
      %p263 = por %p261, %p262
      %s264 = ssub.s32 %s33, %s45
      %s265 = ssub.s32 %s34, %s41
      %s266 = sor.u32 %s264, %s265
      %p267 = scmp.eq.s32.totalorder %s266, 0
      %s269 = sadd.s32 %s268, 1
      %s270 = scalar_select %p267, %s268, %s269
      %p273 = pneg %p267
      %p274 = scmp.eq.s32.totalorder %s26, 3
      %p275 = por %p273, %p274
      %p276 = scmp.ne.s32.totalorder %s268, %s271
      %p277 = scmp.eq.s32.totalorder %s26, 0
      %p278 = por %p276, %p277
      %p279 = scmp.ne.s32.totalorder %s268, %s271
      %p280 = scmp.eq.s32.totalorder %s31, 3
      %p281 = por %p279, %p280
      %p282 = scmp.ne.s32.totalorder %s271, %s272
      %p283 = scmp.eq.s32.totalorder %s31, 0
      %p284 = por %p282, %p283
      %p285 = scmp.ne.s32.totalorder %s271, %s272
      %p286 = scmp.eq.s32.totalorder %s32, 3
      %p287 = por %p285, %p286
      %p289 = scmp.ne.s32.totalorder %s272, %s288
      %p290 = scmp.eq.s32.totalorder %s32, 0
      %p291 = por %p289, %p290
      %s292 = ssub.s32 %s33, %s45
      %s293 = ssub.s32 %s34, %s41
      %s294 = sor.u32 %s292, %s293
      %p295 = scmp.eq.s32.totalorder %s294, 0
      %s297 = sadd.s32 %s296, 1
      %s298 = scalar_select %p295, %s296, %s297
      %p301 = pneg %p295
      %p302 = scmp.eq.s32.totalorder %s26, 3
      %p303 = por %p301, %p302
      %p304 = scmp.ne.s32.totalorder %s296, %s299
      %p305 = scmp.eq.s32.totalorder %s26, 0
      %p306 = por %p304, %p305
      %p307 = scmp.ne.s32.totalorder %s296, %s299
      %p308 = scmp.eq.s32.totalorder %s31, 3
      %p309 = por %p307, %p308
      %p310 = scmp.ne.s32.totalorder %s299, %s300
      %p311 = scmp.eq.s32.totalorder %s31, 0
      %p312 = por %p310, %p311
      %p313 = scmp.ne.s32.totalorder %s299, %s300
      %p314 = scmp.eq.s32.totalorder %s32, 3
      %p315 = por %p313, %p314
      %p317 = scmp.ne.s32.totalorder %s300, %s316
      %p318 = scmp.eq.s32.totalorder %s32, 0
      %p319 = por %p317, %p318
      %s320 = ssub.s32 %s33, %s45
      %s321 = ssub.s32 %s34, %s41
      %s322 = sor.u32 %s320, %s321
      %p323 = scmp.eq.s32.totalorder %s322, 0
      %s325 = sadd.s32 %s324, 1
      %s326 = scalar_select %p323, %s324, %s325
      %p329 = pneg %p323
      %p330 = scmp.eq.s32.totalorder %s26, 3
      %p331 = por %p329, %p330
      %p332 = scmp.ne.s32.totalorder %s324, %s327
      %p333 = scmp.eq.s32.totalorder %s26, 0
      %p334 = por %p332, %p333
      %p335 = scmp.ne.s32.totalorder %s324, %s327
      %p336 = scmp.eq.s32.totalorder %s31, 3
      %p337 = por %p335, %p336
      %p338 = scmp.ne.s32.totalorder %s327, %s328
      %p339 = scmp.eq.s32.totalorder %s31, 0
      %p340 = por %p338, %p339
      %p341 = scmp.ne.s32.totalorder %s327, %s328
      %p342 = scmp.eq.s32.totalorder %s32, 3
      %p343 = por %p341, %p342
      %p345 = scmp.ne.s32.totalorder %s328, %s344
      %p346 = scmp.eq.s32.totalorder %s32, 0
      %p347 = por %p345, %p346
      %s348 = ssub.s32 %s33, %s45
      %s349 = ssub.s32 %s34, %s41
      %s350 = sor.u32 %s348, %s349
      %p351 = scmp.eq.s32.totalorder %s350, 0
      %s353 = sadd.s32 %s352, 1
      %s354 = scalar_select %p351, %s352, %s353
      %p357 = pneg %p351
      %p358 = scmp.eq.s32.totalorder %s26, 3
      %p359 = por %p357, %p358
      %p360 = scmp.ne.s32.totalorder %s352, %s355
      %p361 = scmp.eq.s32.totalorder %s26, 0
      %p362 = por %p360, %p361
      %p363 = scmp.ne.s32.totalorder %s352, %s355
      %p364 = scmp.eq.s32.totalorder %s31, 3
      %p365 = por %p363, %p364
      %p366 = scmp.ne.s32.totalorder %s355, %s356
      %p367 = scmp.eq.s32.totalorder %s31, 0
      %p368 = por %p366, %p367
      %p369 = scmp.ne.s32.totalorder %s355, %s356
      %p370 = scmp.eq.s32.totalorder %s32, 3
      %p371 = por %p369, %p370
      %p373 = scmp.ne.s32.totalorder %s356, %s372
      %p374 = scmp.eq.s32.totalorder %s32, 0
      %p375 = por %p373, %p374
      %s376 = ssub.s32 %s33, %s45
      %s377 = ssub.s32 %s34, %s41
      %s378 = sor.u32 %s376, %s377
      %p379 = scmp.eq.s32.totalorder %s378, 0
      %s381 = sadd.s32 %s380, 1
      %s382 = scalar_select %p379, %s380, %s381
      %p385 = pneg %p379
      %p386 = scmp.eq.s32.totalorder %s26, 3
      %p387 = por %p385, %p386
      %p388 = scmp.ne.s32.totalorder %s380, %s383
      %p389 = scmp.eq.s32.totalorder %s26, 0
      %p390 = por %p388, %p389
      %p391 = scmp.ne.s32.totalorder %s380, %s383
      %p392 = scmp.eq.s32.totalorder %s31, 3
      %p393 = por %p391, %p392
      %p394 = scmp.ne.s32.totalorder %s383, %s384
      %p395 = scmp.eq.s32.totalorder %s31, 0
      %p396 = por %p394, %p395
      %p397 = scmp.ne.s32.totalorder %s383, %s384
      %p398 = scmp.eq.s32.totalorder %s32, 3
      %p399 = por %p397, %p398
      %p401 = scmp.ne.s32.totalorder %s384, %s400
      %p402 = scmp.eq.s32.totalorder %s32, 0
      %p403 = por %p401, %p402
      %s404 = ssub.s32 %s33, %s45
      %s405 = ssub.s32 %s34, %s41
      %s406 = sor.u32 %s404, %s405
      %p407 = scmp.eq.s32.totalorder %s406, 0
      %s409 = sadd.s32 %s408, 1
      %s410 = scalar_select %p407, %s408, %s409
      %p413 = pneg %p407
      %p414 = scmp.eq.s32.totalorder %s26, 3
      %p415 = por %p413, %p414
      %p416 = scmp.ne.s32.totalorder %s408, %s411
      %p417 = scmp.eq.s32.totalorder %s26, 0
      %p418 = por %p416, %p417
      %p419 = scmp.ne.s32.totalorder %s408, %s411
      %p420 = scmp.eq.s32.totalorder %s31, 3
      %p421 = por %p419, %p420
      %p422 = scmp.ne.s32.totalorder %s411, %s412
      %p423 = scmp.eq.s32.totalorder %s31, 0
      %p424 = por %p422, %p423
      %p425 = scmp.ne.s32.totalorder %s411, %s412
      %p426 = scmp.eq.s32.totalorder %s32, 3
      %p427 = por %p425, %p426
      %p429 = scmp.ne.s32.totalorder %s412, %s428
      %p430 = scmp.eq.s32.totalorder %s32, 0
      %p431 = por %p429, %p430
      %s432 = ssub.s32 %s33, %s45
      %s433 = ssub.s32 %s34, %s41
      %s434 = sor.u32 %s432, %s433
      %p435 = scmp.eq.s32.totalorder %s434, 0
      %s437 = sadd.s32 %s436, 1
      %s438 = scalar_select %p435, %s436, %s437
      %p441 = pneg %p435
      %p442 = scmp.eq.s32.totalorder %s26, 3
      %p443 = por %p441, %p442
      %p444 = scmp.ne.s32.totalorder %s436, %s439
      %p445 = scmp.eq.s32.totalorder %s26, 0
      %p446 = por %p444, %p445
      %p447 = scmp.ne.s32.totalorder %s436, %s439
      %p448 = scmp.eq.s32.totalorder %s31, 3
      %p449 = por %p447, %p448
      %p450 = scmp.ne.s32.totalorder %s439, %s440
      %p451 = scmp.eq.s32.totalorder %s31, 0
      %p452 = por %p450, %p451
      %p453 = scmp.ne.s32.totalorder %s439, %s440
      %p454 = scmp.eq.s32.totalorder %s32, 3
      %p455 = por %p453, %p454
      %p457 = scmp.ne.s32.totalorder %s440, %s456
      %p458 = scmp.eq.s32.totalorder %s32, 0
      %p459 = por %p457, %p458
      %s460 = ssub.s32 %s33, %s45
      %p461 = scmp.eq.s32.totalorder %s460, 0
      %s463 = sadd.s32 %s462, 1
      %s464 = scalar_select %p461, %s462, %s463
      %p467 = pneg %p461
      %p468 = scmp.eq.s32.totalorder %s26, 3
      %p469 = por %p467, %p468
      %p470 = scmp.ne.s32.totalorder %s462, %s465
      %p471 = scmp.eq.s32.totalorder %s26, 0
      %p472 = por %p470, %p471
      %p473 = scmp.ne.s32.totalorder %s462, %s465
      %p474 = scmp.eq.s32.totalorder %s31, 3
      %p475 = por %p473, %p474
      %p476 = scmp.ne.s32.totalorder %s465, %s466
      %p477 = scmp.eq.s32.totalorder %s31, 0
      %p478 = por %p476, %p477
      %p479 = scmp.ne.s32.totalorder %s465, %s466
      %p480 = scmp.eq.s32.totalorder %s32, 3
      %p481 = por %p479, %p480
      %p483 = scmp.ne.s32.totalorder %s466, %s482
      %p484 = scmp.eq.s32.totalorder %s32, 0
      %p485 = por %p483, %p484
      %s486 = ssub.s32 %s33, %s45
      %p487 = scmp.eq.s32.totalorder %s486, 0
      %s489 = sadd.s32 %s488, 1
      %s490 = scalar_select %p487, %s488, %s489
      %p493 = pneg %p487
      %p494 = scmp.eq.s32.totalorder %s26, 3
      %p495 = por %p493, %p494
      %p496 = scmp.ne.s32.totalorder %s488, %s491
      %p497 = scmp.eq.s32.totalorder %s26, 0
      %p498 = por %p496, %p497
      %p499 = scmp.ne.s32.totalorder %s488, %s491
      %p500 = scmp.eq.s32.totalorder %s31, 3
      %p501 = por %p499, %p500
      %p502 = scmp.ne.s32.totalorder %s491, %s492
      %p503 = scmp.eq.s32.totalorder %s31, 0
      %p504 = por %p502, %p503
      %p505 = scmp.ne.s32.totalorder %s491, %s492
      %p506 = scmp.eq.s32.totalorder %s32, 3
      %p507 = por %p505, %p506
      %p509 = scmp.ne.s32.totalorder %s492, %s508
      %p510 = scmp.eq.s32.totalorder %s32, 0
      %p511 = por %p509, %p510
      %s512 = ssub.s32 %s33, %s45
      %p513 = scmp.eq.s32.totalorder %s512, 0
      %s515 = sadd.s32 %s514, 1
      %s516 = scalar_select %p513, %s514, %s515
      %p519 = pneg %p513
      %p520 = scmp.eq.s32.totalorder %s26, 3
      %p521 = por %p519, %p520
      %p522 = scmp.ne.s32.totalorder %s514, %s517
      %p523 = scmp.eq.s32.totalorder %s26, 0
      %p524 = por %p522, %p523
      %p525 = scmp.ne.s32.totalorder %s514, %s517
      %p526 = scmp.eq.s32.totalorder %s31, 3
      %p527 = por %p525, %p526
      %p528 = scmp.ne.s32.totalorder %s517, %s518
      %p529 = scmp.eq.s32.totalorder %s31, 0
      %p530 = por %p528, %p529
      %p531 = scmp.ne.s32.totalorder %s517, %s518
      %p532 = scmp.eq.s32.totalorder %s32, 3
      %p533 = por %p531, %p532
      %p535 = scmp.ne.s32.totalorder %s518, %s534
      %p536 = scmp.eq.s32.totalorder %s32, 0
      %p537 = por %p535, %p536
      %p538 = scmp.le.s32.totalorder 1, %s26
      %p539 = scmp.lt.s32.totalorder %s26, 5
      %p540 = pnand %p538, %p539
      %p541 = pneg %p540
      // Predicated region
      $region9: #{_forward_impl.1} parent=5 // pred_check
        _
      $region10: #{_forward_impl.1} parent=5 // pred_check_branch
        %543 = sbr.rel (%p540) target = $region12
      $region11: #{_forward_impl.1} parent=5 // pred_region
        %s544 = ssub.s32 %s26, 1
      $region12: #{_forward_impl.1} parent=5 // pred_fallthru
        _
      %p545 = scmp.lt.s32.totalorder %s26, 4
      // Predicated region
      $region13: #{_forward_impl.1} parent=5 // pred_check
        %p546 = pneg %p545
      $region14: #{_forward_impl.1} parent=5 // pred_check_branch
        %548 = sbr.rel (%p546) target = $region16
      $region15: #{_forward_impl.1} parent=5 // pred_region
        // Predicated region
        $region17: #{_forward_impl.1} parent=15 // pred_check
          %p549 = pneg %p58
        $region18: #{_forward_impl.1} parent=15 // pred_check_branch
          %551 = sbr.rel (%p549) target = $region20
        $region19: #{_forward_impl.1} parent=15 // pred_region
          %p552 = scmp.lt.s32.totalorder %s33, 1
          %s553 = scalar_select %p552, %s33, 1
          %s554 = smul.addr %s553, 2
          %s555 = smul.addr %s554, 8
          %s556 = scalar_lea.vmem %s0, %s555
        $region20: #{_forward_impl.1} parent=15 // pred_fallthru
          _
        // Predicated region
        $region21: #{_forward_impl.1} parent=15 // pred_check
          %p557 = pneg %p84
        $region22: #{_forward_impl.1} parent=15 // pred_check_branch
          %559 = sbr.rel (%p557) target = $region24
        $region23: #{_forward_impl.1} parent=15 // pred_region
          %p560 = scmp.lt.s32.totalorder %s33, 1
          %s561 = scalar_select %p560, %s33, 1
          %s562 = scalar_lea.vmem %s1, %s561
        $region24: #{_forward_impl.1} parent=15 // pred_fallthru
          _
        // Predicated region
        $region25: #{_forward_impl.1} parent=15 // pred_check
          %p563 = pneg %p110
        $region26: #{_forward_impl.1} parent=15 // pred_check_branch
          %565 = sbr.rel (%p563) target = $region28
        $region27: #{_forward_impl.1} parent=15 // pred_region
          %p566 = scmp.lt.s32.totalorder %s33, 1
          %s567 = scalar_select %p566, %s33, 1
          %s568 = scalar_lea.vmem %s2, %s567
        $region28: #{_forward_impl.1} parent=15 // pred_fallthru
          _
        // Predicated region
        $region29: #{_forward_impl.1} parent=15 // pred_check
          %p569 = pneg %p138
        $region30: #{_forward_impl.1} parent=15 // pred_check_branch
          %571 = sbr.rel (%p569) target = $region32
        $region31: #{_forward_impl.1} parent=15 // pred_region
          %p572 = scmp.lt.s32.totalorder %s33, 1
          %s573 = scalar_select %p572, %s33, 1
          %p574 = scmp.lt.s32.totalorder %s34, 1
          %s575 = scalar_select %p574, %s34, 1
          %s576 = smul.addr %s575, 4
          %s577 = smul.addr %s573, 8
          %s578 = sadd.s32 %s576, %s577
          %s579 = smul.addr %s578, 8
          %s580 = scalar_lea.vmem %s3, %s579
        $region32: #{_forward_impl.1} parent=15 // pred_fallthru
          _
        // Predicated region
        $region33: #{_forward_impl.1} parent=15 // pred_check
          %p581 = pneg %p166
        $region34: #{_forward_impl.1} parent=15 // pred_check_branch
          %583 = sbr.rel (%p581) target = $region36
        $region35: #{_forward_impl.1} parent=15 // pred_region
          %p584 = scmp.lt.s32.totalorder %s33, 1
          %s585 = scalar_select %p584, %s33, 1
          %p586 = scmp.lt.s32.totalorder %s34, 1
          %s587 = scalar_select %p586, %s34, 1
          %s588 = smul.addr %s585, 2
          %s589 = sadd.s32 %s587, %s588
          %s590 = scalar_lea.vmem %s4, %s589
        $region36: #{_forward_impl.1} parent=15 // pred_fallthru
          _
        // Predicated region
        $region37: #{_forward_impl.1} parent=15 // pred_check
          %p591 = pneg %p194
        $region38: #{_forward_impl.1} parent=15 // pred_check_branch
          %593 = sbr.rel (%p591) target = $region40
        $region39: #{_forward_impl.1} parent=15 // pred_region
          %p594 = scmp.lt.s32.totalorder %s33, 1
          %s595 = scalar_select %p594, %s33, 1
          %p596 = scmp.lt.s32.totalorder %s34, 1
          %s597 = scalar_select %p596, %s34, 1
          %s598 = smul.addr %s597, 4
          %s599 = smul.addr %s595, 8
          %s600 = sadd.s32 %s598, %s599
          %s601 = smul.addr %s600, 8
          %s602 = scalar_lea.vmem %s5, %s601
        $region40: #{_forward_impl.1} parent=15 // pred_fallthru
          _
        // Predicated region
        $region41: #{_forward_impl.1} parent=15 // pred_check
          %p603 = pneg %p222
        $region42: #{_forward_impl.1} parent=15 // pred_check_branch
          %605 = sbr.rel (%p603) target = $region44
        $region43: #{_forward_impl.1} parent=15 // pred_region
          %p606 = scmp.lt.s32.totalorder %s33, 1
          %s607 = scalar_select %p606, %s33, 1
          %p608 = scmp.lt.s32.totalorder %s34, 1
          %s609 = scalar_select %p608, %s34, 1
          %s610 = smul.addr %s607, 2
          %s611 = sadd.s32 %s609, %s610
          %s612 = scalar_lea.vmem %s6, %s611
        $region44: #{_forward_impl.1} parent=15 // pred_fallthru
          _
        // Predicated region
        $region45: #{_forward_impl.1} parent=15 // pred_check
          %p613 = pneg %p250
        $region46: #{_forward_impl.1} parent=15 // pred_check_branch
          %615 = sbr.rel (%p613) target = $region48
        $region47: #{_forward_impl.1} parent=15 // pred_region
          %p616 = scmp.lt.s32.totalorder %s33, 1
          %s617 = scalar_select %p616, %s33, 1
          %p618 = scmp.lt.s32.totalorder %s34, 1
          %s619 = scalar_select %p618, %s34, 1
          %s620 = smul.addr %s617, 2
          %s621 = sadd.s32 %s619, %s620
          %s622 = scalar_lea.vmem %s7, %s621
        $region48: #{_forward_impl.1} parent=15 // pred_fallthru
          _
        // Predicated region
        $region49: #{_forward_impl.1} parent=15 // pred_check
          %p623 = pneg %p278
        $region50: #{_forward_impl.1} parent=15 // pred_check_branch
          %625 = sbr.rel (%p623) target = $region52
        $region51: #{_forward_impl.1} parent=15 // pred_region
          %p626 = scmp.lt.s32.totalorder %s33, 1
          %s627 = scalar_select %p626, %s33, 1
          %p628 = scmp.lt.s32.totalorder %s34, 1
          %s629 = scalar_select %p628, %s34, 1
          %s630 = smul.addr %s627, 2
          %s631 = sadd.s32 %s629, %s630
          %s632 = scalar_lea.vmem %s8, %s631
        $region52: #{_forward_impl.1} parent=15 // pred_fallthru
          _
        // Predicated region
        $region53: #{_forward_impl.1} parent=15 // pred_check
          %p633 = pneg %p306
        $region54: #{_forward_impl.1} parent=15 // pred_check_branch
          %635 = sbr.rel (%p633) target = $region56
        $region55: #{_forward_impl.1} parent=15 // pred_region
          %p636 = scmp.lt.s32.totalorder %s33, 1
          %s637 = scalar_select %p636, %s33, 1
          %p638 = scmp.lt.s32.totalorder %s34, 1
          %s639 = scalar_select %p638, %s34, 1
          %s640 = smul.addr %s639, 4
          %s641 = smul.addr %s637, 8
          %s642 = sadd.s32 %s640, %s641
          %s643 = smul.addr %s642, 8
          %s644 = scalar_lea.vmem %s9, %s643
        $region56: #{_forward_impl.1} parent=15 // pred_fallthru
          _
        // Predicated region
        $region57: #{_forward_impl.1} parent=15 // pred_check
          %p645 = pneg %p334
        $region58: #{_forward_impl.1} parent=15 // pred_check_branch
          %647 = sbr.rel (%p645) target = $region60
        $region59: #{_forward_impl.1} parent=15 // pred_region
          %p648 = scmp.lt.s32.totalorder %s33, 1
          %s649 = scalar_select %p648, %s33, 1
          %p650 = scmp.lt.s32.totalorder %s34, 1
          %s651 = scalar_select %p650, %s34, 1
          %s652 = smul.addr %s649, 2
          %s653 = sadd.s32 %s651, %s652
          %s654 = scalar_lea.vmem %s10, %s653
        $region60: #{_forward_impl.1} parent=15 // pred_fallthru
          _
        // Predicated region
        $region61: #{_forward_impl.1} parent=15 // pred_check
          %p655 = pneg %p362
        $region62: #{_forward_impl.1} parent=15 // pred_check_branch
          %657 = sbr.rel (%p655) target = $region64
        $region63: #{_forward_impl.1} parent=15 // pred_region
          %p658 = scmp.lt.s32.totalorder %s33, 1
          %s659 = scalar_select %p658, %s33, 1
          %p660 = scmp.lt.s32.totalorder %s34, 1
          %s661 = scalar_select %p660, %s34, 1
          %s662 = smul.addr %s661, 16
          %s663 = smul.addr %s659, 32
          %s664 = sadd.s32 %s662, %s663
          %s665 = smul.addr %s664, 8
          %s666 = scalar_lea.vmem %s11, %s665
        $region64: #{_forward_impl.1} parent=15 // pred_fallthru
          _
        // Predicated region
        $region65: #{_forward_impl.1} parent=15 // pred_check
          %p667 = pneg %p390
        $region66: #{_forward_impl.1} parent=15 // pred_check_branch
          %669 = sbr.rel (%p667) target = $region68
        $region67: #{_forward_impl.1} parent=15 // pred_region
          %p670 = scmp.lt.s32.totalorder %s33, 1
          %s671 = scalar_select %p670, %s33, 1
          %p672 = scmp.lt.s32.totalorder %s34, 1
          %s673 = scalar_select %p672, %s34, 1
          %s674 = smul.addr %s671, 2
          %s675 = sadd.s32 %s673, %s674
          %s676 = scalar_lea.vmem %s12, %s675
        $region68: #{_forward_impl.1} parent=15 // pred_fallthru
          _
        // Predicated region
        $region69: #{_forward_impl.1} parent=15 // pred_check
          %p677 = pneg %p418
        $region70: #{_forward_impl.1} parent=15 // pred_check_branch
          %679 = sbr.rel (%p677) target = $region72
        $region71: #{_forward_impl.1} parent=15 // pred_region
          %p680 = scmp.lt.s32.totalorder %s33, 1
          %s681 = scalar_select %p680, %s33, 1
          %p682 = scmp.lt.s32.totalorder %s34, 1
          %s683 = scalar_select %p682, %s34, 1
          %s684 = smul.addr %s681, 2
          %s685 = sadd.s32 %s683, %s684
          %s686 = scalar_lea.vmem %s13, %s685
        $region72: #{_forward_impl.1} parent=15 // pred_fallthru
          _
        // Predicated region
        $region73: #{_forward_impl.1} parent=15 // pred_check
          %p687 = pneg %p446
        $region74: #{_forward_impl.1} parent=15 // pred_check_branch
          %689 = sbr.rel (%p687) target = $region76
        $region75: #{_forward_impl.1} parent=15 // pred_region
          %p690 = scmp.lt.s32.totalorder %s33, 1
          %s691 = scalar_select %p690, %s33, 1
          %p692 = scmp.lt.s32.totalorder %s34, 1
          %s693 = scalar_select %p692, %s34, 1
          %s694 = smul.addr %s691, 2
          %s695 = sadd.s32 %s693, %s694
          %s696 = scalar_lea.vmem %s14, %s695
        $region76: #{_forward_impl.1} parent=15 // pred_fallthru
          _
        // Predicated region
        $region77: #{_forward_impl.1} parent=15 // pred_check
          %p697 = pneg %p472
        $region78: #{_forward_impl.1} parent=15 // pred_check_branch
          %699 = sbr.rel (%p697) target = $region80
        $region79: #{_forward_impl.1} parent=15 // pred_region
          %p700 = scmp.lt.s32.totalorder %s33, 1
          %s701 = scalar_select %p700, %s33, 1
          %s702 = smul.addr %s701, 4
          %s703 = smul.addr %s702, 8
          %s704 = scalar_lea.vmem %s15, %s703
        $region80: #{_forward_impl.1} parent=15 // pred_fallthru
          _
        // Predicated region
        $region81: #{_forward_impl.1} parent=15 // pred_check
          %p705 = pneg %p498
        $region82: #{_forward_impl.1} parent=15 // pred_check_branch
          %707 = sbr.rel (%p705) target = $region84
        $region83: #{_forward_impl.1} parent=15 // pred_region
          %p708 = scmp.lt.s32.totalorder %s33, 1
          %s709 = scalar_select %p708, %s33, 1
          %s710 = scalar_lea.vmem %s16, %s709
        $region84: #{_forward_impl.1} parent=15 // pred_fallthru
          _
      $region16: #{_forward_impl.1} parent=5 // pred_fallthru
        _
      %p711 = scmp.le.s32.totalorder 1, %s26
      %p712 = scmp.lt.s32.totalorder %s26, 5
      %p713 = pnand %p711, %p712
      %p714 = pneg %p713
      // Predicated region
      $region85: #{_forward_impl.1} parent=5 // pred_check
        _
      $region86: #{_forward_impl.1} parent=5 // pred_check_branch
        %716 = sbr.rel (%p713) target = $region88
      $region87: #{_forward_impl.1} parent=5 // pred_region
        %s717 = ssub.s32 %s26, 1
        %p718 = scmp.lt.s32.totalorder %s35, 1
        %s719 = scalar_select %p718, %s35, 1
        %s720 = smul.addr %s719, 2
        %s721 = smul.addr %s720, 8
        %s722 = scalar_lea.vmem %s0, %s721
        %p723 = pneg %p64
        %p724 = pneg %p61
        %p725 = scmp.lt.s32.totalorder %s35, 1
        %s726 = scalar_select %p725, %s35, 1
        %s727 = scalar_lea.vmem %s1, %s726
        %p728 = pneg %p90
        %p729 = pneg %p87
        %p730 = scmp.lt.s32.totalorder %s35, 1
        %s731 = scalar_select %p730, %s35, 1
        %s732 = scalar_lea.vmem %s2, %s731
        %p733 = pneg %p116
        %p734 = pneg %p113
        %p735 = scmp.lt.s32.totalorder %s35, 1
        %s736 = scalar_select %p735, %s35, 1
        %p737 = scmp.lt.s32.totalorder %s36, 1
        %s738 = scalar_select %p737, %s36, 1
        %s739 = smul.addr %s738, 4
        %s740 = smul.addr %s736, 8
        %s741 = sadd.s32 %s739, %s740
        %s742 = smul.addr %s741, 8
        %s743 = scalar_lea.vmem %s3, %s742
        %p744 = pneg %p144
        %p745 = pneg %p141
        %p746 = scmp.lt.s32.totalorder %s35, 1
        %s747 = scalar_select %p746, %s35, 1
        %p748 = scmp.lt.s32.totalorder %s36, 1
        %s749 = scalar_select %p748, %s36, 1
        %s750 = smul.addr %s747, 2
        %s751 = sadd.s32 %s749, %s750
        %s752 = scalar_lea.vmem %s4, %s751
        %p753 = pneg %p172
        %p754 = pneg %p169
        %p755 = scmp.lt.s32.totalorder %s35, 1
        %s756 = scalar_select %p755, %s35, 1
        %p757 = scmp.lt.s32.totalorder %s36, 1
        %s758 = scalar_select %p757, %s36, 1
        %s759 = smul.addr %s758, 4
        %s760 = smul.addr %s756, 8
        %s761 = sadd.s32 %s759, %s760
        %s762 = smul.addr %s761, 8
        %s763 = scalar_lea.vmem %s5, %s762
        %p764 = pneg %p200
        %p765 = pneg %p197
        %p766 = scmp.lt.s32.totalorder %s35, 1
        %s767 = scalar_select %p766, %s35, 1
        %p768 = scmp.lt.s32.totalorder %s36, 1
        %s769 = scalar_select %p768, %s36, 1
        %s770 = smul.addr %s767, 2
        %s771 = sadd.s32 %s769, %s770
        %s772 = scalar_lea.vmem %s6, %s771
        %p773 = pneg %p228
        %p774 = pneg %p225
        %p775 = scmp.lt.s32.totalorder %s35, 1
        %s776 = scalar_select %p775, %s35, 1
        %p777 = scmp.lt.s32.totalorder %s36, 1
        %s778 = scalar_select %p777, %s36, 1
        %s779 = smul.addr %s776, 2
        %s780 = sadd.s32 %s778, %s779
        %s781 = scalar_lea.vmem %s7, %s780
        %p782 = pneg %p256
        %p783 = pneg %p253
        %p784 = scmp.lt.s32.totalorder %s35, 1
        %s785 = scalar_select %p784, %s35, 1
        %p786 = scmp.lt.s32.totalorder %s36, 1
        %s787 = scalar_select %p786, %s36, 1
        %s788 = smul.addr %s785, 2
        %s789 = sadd.s32 %s787, %s788
        %s790 = scalar_lea.vmem %s8, %s789
        %p791 = pneg %p284
        %p792 = pneg %p281
        %p793 = scmp.lt.s32.totalorder %s35, 1
        %s794 = scalar_select %p793, %s35, 1
        %p795 = scmp.lt.s32.totalorder %s36, 1
        %s796 = scalar_select %p795, %s36, 1
        %s797 = smul.addr %s796, 4
        %s798 = smul.addr %s794, 8
        %s799 = sadd.s32 %s797, %s798
        %s800 = smul.addr %s799, 8
        %s801 = scalar_lea.vmem %s9, %s800
        %p802 = pneg %p312
        %p803 = pneg %p309
        %p804 = scmp.lt.s32.totalorder %s35, 1
        %s805 = scalar_select %p804, %s35, 1
        %p806 = scmp.lt.s32.totalorder %s36, 1
        %s807 = scalar_select %p806, %s36, 1
        %s808 = smul.addr %s805, 2
        %s809 = sadd.s32 %s807, %s808
        %s810 = scalar_lea.vmem %s10, %s809
        %p811 = pneg %p340
        %p812 = pneg %p337
        %p813 = scmp.lt.s32.totalorder %s35, 1
        %s814 = scalar_select %p813, %s35, 1
        %p815 = scmp.lt.s32.totalorder %s36, 1
        %s816 = scalar_select %p815, %s36, 1
        %s817 = smul.addr %s816, 16
        %s818 = smul.addr %s814, 32
        %s819 = sadd.s32 %s817, %s818
        %s820 = smul.addr %s819, 8
        %s821 = scalar_lea.vmem %s11, %s820
        %p822 = pneg %p368
        %p823 = pneg %p365
        %p824 = scmp.lt.s32.totalorder %s35, 1
        %s825 = scalar_select %p824, %s35, 1
        %p826 = scmp.lt.s32.totalorder %s36, 1
        %s827 = scalar_select %p826, %s36, 1
        %s828 = smul.addr %s825, 2
        %s829 = sadd.s32 %s827, %s828
        %s830 = scalar_lea.vmem %s12, %s829
        %p831 = pneg %p396
        %p832 = pneg %p393
        %p833 = scmp.lt.s32.totalorder %s35, 1
        %s834 = scalar_select %p833, %s35, 1
        %p835 = scmp.lt.s32.totalorder %s36, 1
        %s836 = scalar_select %p835, %s36, 1
        %s837 = smul.addr %s834, 2
        %s838 = sadd.s32 %s836, %s837
        %s839 = scalar_lea.vmem %s13, %s838
        %p840 = pneg %p424
        %p841 = pneg %p421
        %p842 = scmp.lt.s32.totalorder %s35, 1
        %s843 = scalar_select %p842, %s35, 1
        %p844 = scmp.lt.s32.totalorder %s36, 1
        %s845 = scalar_select %p844, %s36, 1
        %s846 = smul.addr %s843, 2
        %s847 = sadd.s32 %s845, %s846
        %s848 = scalar_lea.vmem %s14, %s847
        %p849 = pneg %p452
        %p850 = pneg %p449
        %p851 = scmp.lt.s32.totalorder %s35, 1
        %s852 = scalar_select %p851, %s35, 1
        %s853 = smul.addr %s852, 4
        %s854 = smul.addr %s853, 8
        %s855 = scalar_lea.vmem %s15, %s854
        %p856 = pneg %p478
        %p857 = pneg %p475
        %p858 = scmp.lt.s32.totalorder %s35, 1
        %s859 = scalar_select %p858, %s35, 1
        %s860 = scalar_lea.vmem %s16, %s859
        %p861 = pneg %p504
        %p862 = pneg %p501
        %p863 = pneg %p530
        %p864 = pneg %p527
        %s865 = sand.u32 %s517, 1
        %s866 = scalar_lea.sflag [#allocation5], %s865
        %s867 = sand.u32 %s517, 1
        %s868 = smul.addr %s867, 2
        %s869 = scalar_lea.vmem [#allocation4], %s868
        %p870 = scmp.lt.s32.totalorder %s35, 1
        %s871 = scalar_select %p870, %s35, 1
        %s872 = smul.addr %s871, 2
        %s873 = smul.addr %s872, 8
        %s874 = scalar_lea.vmem %s0, %s873
        %p875 = scmp.lt.s32.totalorder %s35, 1
        %s876 = scalar_select %p875, %s35, 1
        %s877 = scalar_lea.vmem %s1, %s876
        %p878 = scmp.lt.s32.totalorder %s35, 1
        %s879 = scalar_select %p878, %s35, 1
        %s880 = scalar_lea.vmem %s2, %s879
        %p881 = scmp.lt.s32.totalorder %s35, 1
        %s882 = scalar_select %p881, %s35, 1
        %p883 = scmp.lt.s32.totalorder %s36, 1
        %s884 = scalar_select %p883, %s36, 1
        %s885 = smul.addr %s884, 4
        %s886 = smul.addr %s882, 8
        %s887 = sadd.s32 %s885, %s886
        %s888 = smul.addr %s887, 8
        %s889 = scalar_lea.vmem %s3, %s888
        %p890 = scmp.lt.s32.totalorder %s35, 1
        %s891 = scalar_select %p890, %s35, 1
        %p892 = scmp.lt.s32.totalorder %s36, 1
        %s893 = scalar_select %p892, %s36, 1
        %s894 = smul.addr %s891, 2
        %s895 = sadd.s32 %s893, %s894
        %s896 = scalar_lea.vmem %s4, %s895
        %p897 = scmp.lt.s32.totalorder %s35, 1
        %s898 = scalar_select %p897, %s35, 1
        %p899 = scmp.lt.s32.totalorder %s36, 1
        %s900 = scalar_select %p899, %s36, 1
        %s901 = smul.addr %s900, 4
        %s902 = smul.addr %s898, 8
        %s903 = sadd.s32 %s901, %s902
        %s904 = smul.addr %s903, 8
        %s905 = scalar_lea.vmem %s5, %s904
        %p906 = scmp.lt.s32.totalorder %s35, 1
        %s907 = scalar_select %p906, %s35, 1
        %p908 = scmp.lt.s32.totalorder %s36, 1
        %s909 = scalar_select %p908, %s36, 1
        %s910 = smul.addr %s907, 2
        %s911 = sadd.s32 %s909, %s910
        %s912 = scalar_lea.vmem %s6, %s911
        %p913 = scmp.lt.s32.totalorder %s35, 1
        %s914 = scalar_select %p913, %s35, 1
        %p915 = scmp.lt.s32.totalorder %s36, 1
        %s916 = scalar_select %p915, %s36, 1
        %s917 = smul.addr %s914, 2
        %s918 = sadd.s32 %s916, %s917
        %s919 = scalar_lea.vmem %s7, %s918
        %p920 = scmp.lt.s32.totalorder %s35, 1
        %s921 = scalar_select %p920, %s35, 1
        %p922 = scmp.lt.s32.totalorder %s36, 1
        %s923 = scalar_select %p922, %s36, 1
        %s924 = smul.addr %s921, 2
        %s925 = sadd.s32 %s923, %s924
        %s926 = scalar_lea.vmem %s8, %s925
        %p927 = scmp.lt.s32.totalorder %s35, 1
        %s928 = scalar_select %p927, %s35, 1
        %p929 = scmp.lt.s32.totalorder %s36, 1
        %s930 = scalar_select %p929, %s36, 1
        %s931 = smul.addr %s930, 4
        %s932 = smul.addr %s928, 8
        %s933 = sadd.s32 %s931, %s932
        %s934 = smul.addr %s933, 8
        %s935 = scalar_lea.vmem %s9, %s934
        %p936 = scmp.lt.s32.totalorder %s35, 1
        %s937 = scalar_select %p936, %s35, 1
        %p938 = scmp.lt.s32.totalorder %s36, 1
        %s939 = scalar_select %p938, %s36, 1
        %s940 = smul.addr %s937, 2
        %s941 = sadd.s32 %s939, %s940
        %s942 = scalar_lea.vmem %s10, %s941
        %p943 = scmp.lt.s32.totalorder %s35, 1
        %s944 = scalar_select %p943, %s35, 1
        %p945 = scmp.lt.s32.totalorder %s36, 1
        %s946 = scalar_select %p945, %s36, 1
        %s947 = smul.addr %s946, 16
        %s948 = smul.addr %s944, 32
        %s949 = sadd.s32 %s947, %s948
        %s950 = smul.addr %s949, 8
        %s951 = scalar_lea.vmem %s11, %s950
        %p952 = scmp.lt.s32.totalorder %s35, 1
        %s953 = scalar_select %p952, %s35, 1
        %p954 = scmp.lt.s32.totalorder %s36, 1
        %s955 = scalar_select %p954, %s36, 1
        %s956 = smul.addr %s953, 2
        %s957 = sadd.s32 %s955, %s956
        %s958 = scalar_lea.vmem %s12, %s957
        %p959 = scmp.lt.s32.totalorder %s35, 1
        %s960 = scalar_select %p959, %s35, 1
        %p961 = scmp.lt.s32.totalorder %s36, 1
        %s962 = scalar_select %p961, %s36, 1
        %s963 = smul.addr %s960, 2
        %s964 = sadd.s32 %s962, %s963
        %s965 = scalar_lea.vmem %s13, %s964
        %p966 = scmp.lt.s32.totalorder %s35, 1
        %s967 = scalar_select %p966, %s35, 1
        %p968 = scmp.lt.s32.totalorder %s36, 1
        %s969 = scalar_select %p968, %s36, 1
        %s970 = smul.addr %s967, 2
        %s971 = sadd.s32 %s969, %s970
        %s972 = scalar_lea.vmem %s14, %s971
        %p973 = scmp.lt.s32.totalorder %s35, 1
        %s974 = scalar_select %p973, %s35, 1
        %s975 = smul.addr %s974, 4
        %s976 = smul.addr %s975, 8
        %s977 = scalar_lea.vmem %s15, %s976
        %p978 = scmp.lt.s32.totalorder %s35, 1
        %s979 = scalar_select %p978, %s35, 1
        %s980 = scalar_lea.vmem %s16, %s979
        %p981 = scmp.eq.s32.totalorder %s36, 0
        // Predicated region
        $region89: #{_forward_impl.1} parent=87 // pred_check
          %p982 = pneg %p981
        $region90: #{_forward_impl.1} parent=87 // pred_check_branch
          %984 = sbr.rel (%p982) target = $region92
        $region91: #{_forward_impl.1} parent=87 // pred_region
          %v985 = vld [vmem:[%s874] sm:$0xff]
          %v986 = vld [vmem:[%s874 + $0x8] sm:$0xff]
          %v987 = vld [vmem:[%s877] sm:$0x1]
          %v988 = vld [vmem:[%s880] sm:$0x1]
          %vm989 = vcmask 261120
          %v990 = vsel %vm989, %v985, 0.0
          %991 = vadd.xlane.f32.xlu0 %v990
          %v992 = vpop.xlane.xlu0 %991
          %v993 = vsel %vm989, %v986, 0.0
          %994 = vadd.xlane.f32.xlu0 %v993
          %v995 = vpop.xlane.xlu0 %994
          %v996 = vrcp.pop 32.0
          %v997 = vmul.f32 32.0, %v996
          %v998 = vsub.f32 1.0, %v997
          %v999 = vmul.f32 %v996, %v998
          %v1000 = vadd.f32 %v996, %v999
          %vm1001 = vweird.f32 %v996
          %v1002 = vsel %vm1001, %v996, %v1000
          %v1003 = vmul.f32 %v992, %v1002
          %v1004 = vmul.f32 %v995, %v1002
          %v1005 = vsub.f32 %v985, %v1003
          %v1006 = vsub.f32 %v986, %v1004
          %v1007 = vmul.f32 %v1005, %v1005
          %v1008 = vmul.f32 %v1006, %v1006
          %v1009 = vsel %vm989, %v1007, 0.0
          %1010 = vadd.xlane.f32.xlu0 %v1009
          %v1011 = vpop.xlane.xlu0 %1010
          %v1012 = vsel %vm989, %v1008, 0.0
          %1013 = vadd.xlane.f32.xlu0 %v1012
          %v1014 = vpop.xlane.xlu0 %1013
          %v1015 = vmul.f32 %v1011, %v1002
          %v1016 = vmul.f32 %v1014, %v1002
          %v1017 = vadd.f32 %v1015, 1e-12
          %v1018 = vadd.f32 %v1016, 1e-12
          %v1019 = vrsqrt.pop %v1017
          %v1020 = vmul.f32 %v1019, %v1017
          %v1021 = vmul.f32 %v1020, %v1019
          %v1022 = vmul.f32 0.5, %v1021
          %v1023 = vsub.f32 1.5, %v1022
          %v1024 = vmul.f32 %v1019, %v1023
          %vm1025 = vweird.f32 %v1017
          %vm1026 = vweird.f32 %v1019
          %vm1027 = vmor %vm1025, %vm1026
          %v1028 = vsel %vm1027, %v1019, %v1024
          %v1029 = vrsqrt.pop %v1018
          %v1030 = vmul.f32 %v1029, %v1018
          %v1031 = vmul.f32 %v1030, %v1029
          %v1032 = vmul.f32 0.5, %v1031
          %v1033 = vsub.f32 1.5, %v1032
          %v1034 = vmul.f32 %v1029, %v1033
          %vm1035 = vweird.f32 %v1018
          %vm1036 = vweird.f32 %v1029
          %vm1037 = vmor %vm1035, %vm1036
          %v1038 = vsel %vm1037, %v1029, %v1034
          %v1039 = vmul.f32 %v1005, %v1028
          %v1040 = vmul.f32 %v1006, %v1038
          %v1042 = vperm.slane %v987, 0
          %v1044 = vmul.f32 %v1039, %v1042
          %v1045 = vmul.f32 %v1040, %v1042
          %v1047 = vperm.slane %v988, 0
          %v1049 = vadd.f32 %v1044, %v1047
          %v1050 = vadd.f32 %v1045, %v1047
          %1051 = vst.msk [vmem:[#allocation2] sm:$0xff] %vm989, %v1049
          %1052 = vst.msk [vmem:[#allocation2 + $0x8] sm:$0xff] %vm989, %v1050
        $region92: #{_forward_impl.1} parent=87 // pred_fallthru
          _
        %v1053 = vld [vmem:[#allocation2] sm:$0xff]
        %v1054 = vld [vmem:[#allocation2 + $0x8] sm:$0xff]
        %v1055 = vld [vmem:[%s889] sm:$0xff]
        %v1056 = vld [vmem:[%s889 + $0x8] sm:$0xff]
        %v1057 = vld [vmem:[%s889 + $0x10] sm:$0xff]
        %v1058 = vld [vmem:[%s889 + $0x18] sm:$0xff]
        %v1059 = vld [vmem:[%s896] sm:$0x1]
        %v1061 = vperm.slane %v1059, 0
        %vm1063 = vcmask 261120
        %v1065 = vsel %vm1063, %v1053, 0
        %v1068 = vsel %vm1063, %v1054, 0
        %1070 = vmatpush.msra.mxu0 0.0
        %1071 = vmatpush.msra.mxu0 0.0
        %1072 = vmatpush.msra.mxu0 0.0
        %1073 = vmatpush.msra.mxu0 0.0
        %1074 = vmatpush.msra.mxu0 0.0
        %1075 = vmatpush.msra.mxu0 0.0
        %1076 = vmatpush.msra.mxu0 0.0
        %1077 = vmatpush.msra.mxu0 0.0
        %1078 = vmatpush.msra.mxu0 0.0
        %1079 = vmatpush.msra.mxu0 0.0
        %1080 = vmatpush.msra.mxu0 0.0
        %1081 = vmatpush.msra.mxu0 0.0
        %1082 = vmatpush.msra.mxu0 %v1058
        %1083 = vmatpush.msra.mxu0 %v1057
        %1084 = vmatpush.msra.mxu0 %v1056
        %1085 = vmatpush.msra.mxu0 %v1055
        %1086 = vmatmul.f32.gmra.mxu0 %v1065
        %v1087 = vpop.f32.mrf.mxu0
        %v1088 = vadd.f32 %v1061, %v1087
        %1089 = vmatmul.f32.gmra.mxu0 %v1068
        %v1090 = vpop.f32.mrf.mxu0
        %v1091 = vadd.f32 %v1061, %v1090
        %1092 = vdwg.mxu0
        %1094 = vrot.lane.b32.xlu0 %v1088, 96
        %v1095 = vpop.permute.xlu0 %1094
        %vm1096 = vcmask 130048
        %v1097 = vsel %vm1096, %v1088, 0
        %v1099 = vsel %vm1096, %v1095, 0
        %1101 = vmatpush.xpose.msra.mxu0 0.0
        %1102 = vmatpush.xpose.msra.mxu0 0.0
        %1103 = vmatpush.xpose.msra.mxu0 0.0
        %1104 = vmatpush.xpose.msra.mxu0 0.0
        %1105 = vmatpush.xpose.msra.mxu0 0.0
        %1106 = vmatpush.xpose.msra.mxu0 0.0
        %1107 = vmatpush.xpose.msra.mxu0 0.0
        %1108 = vmatpush.xpose.msra.mxu0 0.0
        %1109 = vmatpush.xpose.msra.mxu0 0.0
        %1110 = vmatpush.xpose.msra.mxu0 0.0
        %1111 = vmatpush.xpose.msra.mxu0 0.0
        %1112 = vmatpush.xpose.msra.mxu0 0.0
        %1113 = vmatpush.xpose.msra.mxu0 0.0
        %1114 = vmatpush.xpose.msra.mxu0 0.0
        %1115 = vmatpush.xpose.msra.mxu0 0.0
        %1116 = vmatpush.xpose.msra.mxu0 %v1099
        %1117 = vmatmul.f32.gmra.mxu0 %v1097
        %v1118 = vpop.f32.mrf.mxu0
        %v1119 = vadd.f32 0.0, %v1118
        %1120 = vdwg.mxu0
        %v1121 = vmul.f32 %v1119, 0.25
        %vm1122 = vcmask 64512
        %v1123 = vsel %vm1122, %v1121, -inf
        %1124 = vmax.xlane.f32.xlu0 %v1123
        %v1125 = vpop.xlane.xlu0 %1124
        %v1126 = vsub.f32 %v1121, %v1125
        %v1127 = vmul.f32 %v1126, 1.442695
        %v1128 = vpow.pop %v1127
        %v1129 = vsel %vm1122, %v1128, 0.0
        %1130 = vadd.xlane.f32.xlu0 %v1129
        %v1131 = vpop.xlane.xlu0 %1130
        %v1132 = vrcp.pop %v1131
        %v1133 = vmul.f32 %v1128, %v1132
        %1134 = vrot.lane.b32.xlu0 %v1088, 64
        %v1135 = vpop.permute.xlu0 %1134
        %v1138 = vsel %vm1122, %v1133, 0
        %1140 = vmatpush.msra.mxu0 0.0
        %1141 = vmatpush.msra.mxu0 0.0
        %1142 = vmatpush.msra.mxu0 0.0
        %1143 = vmatpush.msra.mxu0 0.0
        %1144 = vmatpush.msra.mxu0 0.0
        %1145 = vmatpush.msra.mxu0 0.0
        %1146 = vmatpush.msra.mxu0 0.0
        %1147 = vmatpush.msra.mxu0 0.0
        %1148 = vmatpush.msra.mxu0 0.0
        %1149 = vmatpush.msra.mxu0 0.0
        %1150 = vmatpush.msra.mxu0 0.0
        %1151 = vmatpush.msra.mxu0 0.0
        %1152 = vmatpush.msra.mxu0 0.0
        %1153 = vmatpush.msra.mxu0 0.0
        %1154 = vmatpush.msra.mxu0 0.0
        %1155 = vmatpush.msra.mxu0 %v1135
        %1156 = vmatmul.f32.gmra.mxu0 %v1138
        %v1157 = vpop.f32.mrf.mxu0
        %v1158 = vadd.f32 0.0, %v1157
        %1159 = vdwg.mxu0
        %1160 = vst.msk [vmem:[#allocation3] sm:$0xff] %vm1096, %v1158
        %1161 = vrot.lane.b32.xlu0 %v1088, 112
        %v1162 = vpop.permute.xlu0 %1161
        %1163 = vrot.lane.b32.xlu0 %v1088, 80
        %v1164 = vpop.permute.xlu0 %1163
        %v1165 = vsel %vm1096, %v1162, 0
        %v1167 = vsel %vm1096, %v1164, 0
        %1169 = vmatpush.xpose.msra.mxu0 0.0
        %1170 = vmatpush.xpose.msra.mxu0 0.0
        %1171 = vmatpush.xpose.msra.mxu0 0.0
        %1172 = vmatpush.xpose.msra.mxu0 0.0
        %1173 = vmatpush.xpose.msra.mxu0 0.0
        %1174 = vmatpush.xpose.msra.mxu0 0.0
        %1175 = vmatpush.xpose.msra.mxu0 0.0
        %1176 = vmatpush.xpose.msra.mxu0 0.0
        %1177 = vmatpush.xpose.msra.mxu0 0.0
        %1178 = vmatpush.xpose.msra.mxu0 0.0
        %1179 = vmatpush.xpose.msra.mxu0 0.0
        %1180 = vmatpush.xpose.msra.mxu0 0.0
        %1181 = vmatpush.xpose.msra.mxu0 0.0
        %1182 = vmatpush.xpose.msra.mxu0 0.0
        %1183 = vmatpush.xpose.msra.mxu0 0.0
        %1184 = vmatpush.xpose.msra.mxu0 %v1167
        %1185 = vmatmul.f32.gmra.mxu0 %v1165
        %v1186 = vpop.f32.mrf.mxu0
        %v1187 = vadd.f32 0.0, %v1186
        %1188 = vdwg.mxu0
        %v1189 = vmul.f32 %v1187, 0.25
        %v1190 = vsel %vm1122, %v1189, -inf
        %1191 = vmax.xlane.f32.xlu0 %v1190
        %v1192 = vpop.xlane.xlu0 %1191
        %v1193 = vsub.f32 %v1189, %v1192
        %v1194 = vmul.f32 %v1193, 1.442695
        %v1195 = vpow.pop %v1194
        %v1196 = vsel %vm1122, %v1195, 0.0
        %1197 = vadd.xlane.f32.xlu0 %v1196
        %v1198 = vpop.xlane.xlu0 %1197
        %v1199 = vrcp.pop %v1198
        %v1200 = vmul.f32 %v1195, %v1199
        %1201 = vrot.lane.b32.xlu0 %v1088, 48
        %v1202 = vpop.permute.xlu0 %1201
        %v1205 = vsel %vm1122, %v1200, 0
        %1207 = vmatpush.msra.mxu0 0.0
        %1208 = vmatpush.msra.mxu0 0.0
        %1209 = vmatpush.msra.mxu0 0.0
        %1210 = vmatpush.msra.mxu0 0.0
        %1211 = vmatpush.msra.mxu0 0.0
        %1212 = vmatpush.msra.mxu0 0.0
        %1213 = vmatpush.msra.mxu0 0.0
        %1214 = vmatpush.msra.mxu0 0.0
        %1215 = vmatpush.msra.mxu0 0.0
        %1216 = vmatpush.msra.mxu0 0.0
        %1217 = vmatpush.msra.mxu0 0.0
        %1218 = vmatpush.msra.mxu0 0.0
        %1219 = vmatpush.msra.mxu0 0.0
        %1220 = vmatpush.msra.mxu0 0.0
        %1221 = vmatpush.msra.mxu0 0.0
        %1222 = vmatpush.msra.mxu0 %v1202
        %1223 = vmatmul.f32.gmra.mxu0 %v1205
        %v1224 = vpop.f32.mrf.mxu0
        %v1225 = vadd.f32 0.0, %v1224
        %1226 = vdwg.mxu0
        %1228 = vrot.lane.b32.xlu0 %v1225, 16
        %v1229 = vpop.permute.xlu0 %1228
        %vm1231 = vcmask 261248
        %1232 = vst.msk [vmem:[#allocation3] sm:$0xff] %vm1231, %v1229
        %1234 = vrot.lane.b32.xlu0 %v1091, 96
        %v1235 = vpop.permute.xlu0 %1234
        %v1236 = vsel %vm1096, %v1091, 0
        %v1238 = vsel %vm1096, %v1235, 0
        %1240 = vmatpush.xpose.msra.mxu0 0.0
        %1241 = vmatpush.xpose.msra.mxu0 0.0
        %1242 = vmatpush.xpose.msra.mxu0 0.0
        %1243 = vmatpush.xpose.msra.mxu0 0.0
        %1244 = vmatpush.xpose.msra.mxu0 0.0
        %1245 = vmatpush.xpose.msra.mxu0 0.0
        %1246 = vmatpush.xpose.msra.mxu0 0.0
        %1247 = vmatpush.xpose.msra.mxu0 0.0
        %1248 = vmatpush.xpose.msra.mxu0 0.0
        %1249 = vmatpush.xpose.msra.mxu0 0.0
        %1250 = vmatpush.xpose.msra.mxu0 0.0
        %1251 = vmatpush.xpose.msra.mxu0 0.0
        %1252 = vmatpush.xpose.msra.mxu0 0.0
        %1253 = vmatpush.xpose.msra.mxu0 0.0
        %1254 = vmatpush.xpose.msra.mxu0 0.0
        %1255 = vmatpush.xpose.msra.mxu0 %v1238
        %1256 = vmatmul.f32.gmra.mxu0 %v1236
        %v1257 = vpop.f32.mrf.mxu0
        %v1258 = vadd.f32 0.0, %v1257
        %1259 = vdwg.mxu0
        %v1260 = vmul.f32 %v1258, 0.25
        %v1261 = vsel %vm1122, %v1260, -inf
        %1262 = vmax.xlane.f32.xlu0 %v1261
        %v1263 = vpop.xlane.xlu0 %1262
        %v1264 = vsub.f32 %v1260, %v1263
        %v1265 = vmul.f32 %v1264, 1.442695
        %v1266 = vpow.pop %v1265
        %v1267 = vsel %vm1122, %v1266, 0.0
        %1268 = vadd.xlane.f32.xlu0 %v1267
        %v1269 = vpop.xlane.xlu0 %1268
        %v1270 = vrcp.pop %v1269
        %v1271 = vmul.f32 %v1266, %v1270
        %1272 = vrot.lane.b32.xlu0 %v1091, 64
        %v1273 = vpop.permute.xlu0 %1272
        %v1276 = vsel %vm1122, %v1271, 0
        %1278 = vmatpush.msra.mxu0 0.0
        %1279 = vmatpush.msra.mxu0 0.0
        %1280 = vmatpush.msra.mxu0 0.0
        %1281 = vmatpush.msra.mxu0 0.0
        %1282 = vmatpush.msra.mxu0 0.0
        %1283 = vmatpush.msra.mxu0 0.0
        %1284 = vmatpush.msra.mxu0 0.0
        %1285 = vmatpush.msra.mxu0 0.0
        %1286 = vmatpush.msra.mxu0 0.0
        %1287 = vmatpush.msra.mxu0 0.0
        %1288 = vmatpush.msra.mxu0 0.0
        %1289 = vmatpush.msra.mxu0 0.0
        %1290 = vmatpush.msra.mxu0 0.0
        %1291 = vmatpush.msra.mxu0 0.0
        %1292 = vmatpush.msra.mxu0 0.0
        %1293 = vmatpush.msra.mxu0 %v1273
        %1294 = vmatmul.f32.gmra.mxu0 %v1276
        %v1295 = vpop.f32.mrf.mxu0
        %v1296 = vadd.f32 0.0, %v1295
        %1297 = vdwg.mxu0
        %1298 = vst.msk [vmem:[#allocation3 + $0x8] sm:$0xff] %vm1096, %v1296
        %1299 = vrot.lane.b32.xlu0 %v1091, 112
        %v1300 = vpop.permute.xlu0 %1299
        %1301 = vrot.lane.b32.xlu0 %v1091, 80
        %v1302 = vpop.permute.xlu0 %1301
        %v1303 = vsel %vm1096, %v1300, 0
        %v1305 = vsel %vm1096, %v1302, 0
        %1307 = vmatpush.xpose.msra.mxu0 0.0
        %1308 = vmatpush.xpose.msra.mxu0 0.0
        %1309 = vmatpush.xpose.msra.mxu0 0.0
        %1310 = vmatpush.xpose.msra.mxu0 0.0
        %1311 = vmatpush.xpose.msra.mxu0 0.0
        %1312 = vmatpush.xpose.msra.mxu0 0.0
        %1313 = vmatpush.xpose.msra.mxu0 0.0
        %1314 = vmatpush.xpose.msra.mxu0 0.0
        %1315 = vmatpush.xpose.msra.mxu0 0.0
        %1316 = vmatpush.xpose.msra.mxu0 0.0
        %1317 = vmatpush.xpose.msra.mxu0 0.0
        %1318 = vmatpush.xpose.msra.mxu0 0.0
        %1319 = vmatpush.xpose.msra.mxu0 0.0
        %1320 = vmatpush.xpose.msra.mxu0 0.0
        %1321 = vmatpush.xpose.msra.mxu0 0.0
        %1322 = vmatpush.xpose.msra.mxu0 %v1305
        %1323 = vmatmul.f32.gmra.mxu0 %v1303
        %v1324 = vpop.f32.mrf.mxu0
        %v1325 = vadd.f32 0.0, %v1324
        %1326 = vdwg.mxu0
        %v1327 = vmul.f32 %v1325, 0.25
        %v1328 = vsel %vm1122, %v1327, -inf
        %1329 = vmax.xlane.f32.xlu0 %v1328
        %v1330 = vpop.xlane.xlu0 %1329
        %v1331 = vsub.f32 %v1327, %v1330
        %v1332 = vmul.f32 %v1331, 1.442695
        %v1333 = vpow.pop %v1332
        %v1334 = vsel %vm1122, %v1333, 0.0
        %1335 = vadd.xlane.f32.xlu0 %v1334
        %v1336 = vpop.xlane.xlu0 %1335
        %v1337 = vrcp.pop %v1336
        %v1338 = vmul.f32 %v1333, %v1337
        %1339 = vrot.lane.b32.xlu0 %v1091, 48
        %v1340 = vpop.permute.xlu0 %1339
        %v1343 = vsel %vm1122, %v1338, 0
        %1345 = vmatpush.msra.mxu0 0.0
        %1346 = vmatpush.msra.mxu0 0.0
        %1347 = vmatpush.msra.mxu0 0.0
        %1348 = vmatpush.msra.mxu0 0.0
        %1349 = vmatpush.msra.mxu0 0.0
        %1350 = vmatpush.msra.mxu0 0.0
        %1351 = vmatpush.msra.mxu0 0.0
        %1352 = vmatpush.msra.mxu0 0.0
        %1353 = vmatpush.msra.mxu0 0.0
        %1354 = vmatpush.msra.mxu0 0.0
        %1355 = vmatpush.msra.mxu0 0.0
        %1356 = vmatpush.msra.mxu0 0.0
        %1357 = vmatpush.msra.mxu0 0.0
        %1358 = vmatpush.msra.mxu0 0.0
        %1359 = vmatpush.msra.mxu0 0.0
        %1360 = vmatpush.msra.mxu0 %v1340
        %1361 = vmatmul.f32.gmra.mxu0 %v1343
        %v1362 = vpop.f32.mrf.mxu0
        %v1363 = vadd.f32 0.0, %v1362
        %1364 = vdwg.mxu0
        %1366 = vrot.lane.b32.xlu0 %v1363, 16
        %v1367 = vpop.permute.xlu0 %1366
        %1369 = vst.msk [vmem:[#allocation3 + $0x8] sm:$0xff] %vm1231, %v1367
        %v1370 = vld [vmem:[#allocation3] sm:$0xff]
        %v1371 = vld [vmem:[#allocation3 + $0x8] sm:$0xff]
        %v1372 = vld [vmem:[%s905] sm:$0xff]
        %v1373 = vld [vmem:[%s905 + $0x8] sm:$0xff]
        %v1374 = vld [vmem:[%s905 + $0x10] sm:$0xff]
        %v1375 = vld [vmem:[%s905 + $0x18] sm:$0xff]
        %v1376 = vld [vmem:[%s912] sm:$0x1]
        %v1378 = vperm.slane %v1376, 0
        %v1381 = vsel %vm1063, %v1370, 0
        %v1384 = vsel %vm1063, %v1371, 0
        %1386 = vmatpush.msra.mxu0 0.0
        %1387 = vmatpush.msra.mxu0 0.0
        %1388 = vmatpush.msra.mxu0 0.0
        %1389 = vmatpush.msra.mxu0 0.0
        %1390 = vmatpush.msra.mxu0 0.0
        %1391 = vmatpush.msra.mxu0 0.0
        %1392 = vmatpush.msra.mxu0 0.0
        %1393 = vmatpush.msra.mxu0 0.0
        %1394 = vmatpush.msra.mxu0 0.0
        %1395 = vmatpush.msra.mxu0 0.0
        %1396 = vmatpush.msra.mxu0 0.0
        %1397 = vmatpush.msra.mxu0 0.0
        %1398 = vmatpush.msra.mxu0 %v1375
        %1399 = vmatpush.msra.mxu0 %v1374
        %1400 = vmatpush.msra.mxu0 %v1373
        %1401 = vmatpush.msra.mxu0 %v1372
        %1402 = vmatmul.f32.gmra.mxu0 %v1381
        %v1403 = vpop.f32.mrf.mxu0
        %v1404 = vadd.f32 %v1378, %v1403
        %1405 = vmatmul.f32.gmra.mxu0 %v1384
        %v1406 = vpop.f32.mrf.mxu0
        %v1407 = vadd.f32 %v1378, %v1406
        %1408 = vdwg.mxu0
        %v1409 = vadd.f32 %v1053, %v1404
        %v1410 = vadd.f32 %v1054, %v1407
        %v1411 = vld [vmem:[%s919] sm:$0x1]
        %v1412 = vld [vmem:[%s926] sm:$0x1]
        %v1413 = vsel %vm1063, %v1409, 0.0
        %1414 = vadd.xlane.f32.xlu0 %v1413
        %v1415 = vpop.xlane.xlu0 %1414
        %v1416 = vsel %vm1063, %v1410, 0.0
        %1417 = vadd.xlane.f32.xlu0 %v1416
        %v1418 = vpop.xlane.xlu0 %1417
        %v1419 = vrcp.pop 32.0
        %v1420 = vmul.f32 32.0, %v1419
        %v1421 = vsub.f32 1.0, %v1420
        %v1422 = vmul.f32 %v1419, %v1421
        %v1423 = vadd.f32 %v1419, %v1422
        %vm1424 = vweird.f32 %v1419
        %v1425 = vsel %vm1424, %v1419, %v1423
        %v1426 = vmul.f32 %v1415, %v1425
        %v1427 = vmul.f32 %v1418, %v1425
        %v1428 = vsub.f32 %v1409, %v1426
        %v1429 = vsub.f32 %v1410, %v1427
        %v1430 = vmul.f32 %v1428, %v1428
        %v1431 = vmul.f32 %v1429, %v1429
        %v1432 = vsel %vm1063, %v1430, 0.0
        %1433 = vadd.xlane.f32.xlu0 %v1432
        %v1434 = vpop.xlane.xlu0 %1433
        %v1435 = vsel %vm1063, %v1431, 0.0
        %1436 = vadd.xlane.f32.xlu0 %v1435
        %v1437 = vpop.xlane.xlu0 %1436
        %v1438 = vmul.f32 %v1434, %v1425
        %v1439 = vmul.f32 %v1437, %v1425
        %v1440 = vadd.f32 %v1438, 1e-12
        %v1441 = vadd.f32 %v1439, 1e-12
        %v1442 = vrsqrt.pop %v1440
        %v1443 = vmul.f32 %v1442, %v1440
        %v1444 = vmul.f32 %v1443, %v1442
        %v1445 = vmul.f32 0.5, %v1444
        %v1446 = vsub.f32 1.5, %v1445
        %v1447 = vmul.f32 %v1442, %v1446
        %vm1448 = vweird.f32 %v1440
        %vm1449 = vweird.f32 %v1442
        %vm1450 = vmor %vm1448, %vm1449
        %v1451 = vsel %vm1450, %v1442, %v1447
        %v1452 = vrsqrt.pop %v1441
        %v1453 = vmul.f32 %v1452, %v1441
        %v1454 = vmul.f32 %v1453, %v1452
        %v1455 = vmul.f32 0.5, %v1454
        %v1456 = vsub.f32 1.5, %v1455
        %v1457 = vmul.f32 %v1452, %v1456
        %vm1458 = vweird.f32 %v1441
        %vm1459 = vweird.f32 %v1452
        %vm1460 = vmor %vm1458, %vm1459
        %v1461 = vsel %vm1460, %v1452, %v1457
        %v1462 = vmul.f32 %v1428, %v1451
        %v1463 = vmul.f32 %v1429, %v1461
        %v1465 = vperm.slane %v1411, 0
        %v1467 = vmul.f32 %v1462, %v1465
        %v1468 = vmul.f32 %v1463, %v1465
        %v1470 = vperm.slane %v1412, 0
        %v1472 = vadd.f32 %v1467, %v1470
        %v1473 = vadd.f32 %v1468, %v1470
        %v1474 = vld [vmem:[%s935] sm:$0xff]
        %v1475 = vld [vmem:[%s935 + $0x8] sm:$0xff]
        %v1476 = vld [vmem:[%s935 + $0x10] sm:$0xff]
        %v1477 = vld [vmem:[%s935 + $0x18] sm:$0xff]
        %v1478 = vld [vmem:[%s942] sm:$0x1]
        %v1480 = vperm.slane %v1478, 0
        %v1483 = vsel %vm1063, %v1472, 0
        %v1486 = vsel %vm1063, %v1473, 0
        %1488 = vmatpush.msra.mxu0 0.0
        %1489 = vmatpush.msra.mxu0 0.0
        %1490 = vmatpush.msra.mxu0 0.0
        %1491 = vmatpush.msra.mxu0 0.0
        %1492 = vmatpush.msra.mxu0 0.0
        %1493 = vmatpush.msra.mxu0 0.0
        %1494 = vmatpush.msra.mxu0 0.0
        %1495 = vmatpush.msra.mxu0 0.0
        %1496 = vmatpush.msra.mxu0 0.0
        %1497 = vmatpush.msra.mxu0 0.0
        %1498 = vmatpush.msra.mxu0 0.0
        %1499 = vmatpush.msra.mxu0 0.0
        %1500 = vmatpush.msra.mxu0 %v1477
        %1501 = vmatpush.msra.mxu0 %v1476
        %1502 = vmatpush.msra.mxu0 %v1475
        %1503 = vmatpush.msra.mxu0 %v1474
        %1504 = vmatmul.f32.gmra.mxu0 %v1483
        %v1505 = vpop.f32.mrf.mxu0
        %v1506 = vadd.f32 %v1480, %v1505
        %1507 = vmatmul.f32.gmra.mxu0 %v1486
        %v1508 = vpop.f32.mrf.mxu0
        %v1509 = vadd.f32 %v1480, %v1508
        %1510 = vdwg.mxu0
        %v1511 = vmul.f32 %v1506, 0.5
        %v1512 = vmul.f32 %v1509, 0.5
        %v1513 = vmul.f32 %v1506, 0.044715
        %v1514 = vmul.f32 %v1509, 0.044715
        %v1515 = vmul.f32 %v1513, %v1506
        %v1516 = vmul.f32 %v1514, %v1509
        %v1517 = vmul.f32 %v1515, %v1506
        %v1518 = vmul.f32 %v1516, %v1509
        %v1519 = vadd.f32 %v1506, %v1517
        %v1520 = vadd.f32 %v1509, %v1518
        %v1521 = vmul.f32 %v1519, 0.7978846
        %v1522 = vmul.f32 %v1520, 0.7978846
        %v1523 = vtanh.pop %v1521
        %v1524 = vtanh.pop %v1522
        %v1525 = vadd.f32 %v1523, 1.0
        %v1526 = vadd.f32 %v1524, 1.0
        %v1527 = vmul.f32 %v1511, %v1525
        %v1528 = vmul.f32 %v1512, %v1526
        %v1529 = vld [vmem:[%s951] sm:$0xff]
        %v1530 = vld [vmem:[%s951 + $0x8] sm:$0xff]
        %v1531 = vld [vmem:[%s951 + $0x10] sm:$0xff]
        %v1532 = vld [vmem:[%s951 + $0x18] sm:$0xff]
        %v1533 = vld [vmem:[%s951 + $0x20] sm:$0xff]
        %v1534 = vld [vmem:[%s951 + $0x28] sm:$0xff]
        %v1535 = vld [vmem:[%s951 + $0x30] sm:$0xff]
        %v1536 = vld [vmem:[%s951 + $0x38] sm:$0xff]
        %v1537 = vld [vmem:[%s951 + $0x40] sm:$0xff]
        %v1538 = vld [vmem:[%s951 + $0x48] sm:$0xff]
        %v1539 = vld [vmem:[%s951 + $0x50] sm:$0xff]
        %v1540 = vld [vmem:[%s951 + $0x58] sm:$0xff]
        %v1541 = vld [vmem:[%s951 + $0x60] sm:$0xff]
        %v1542 = vld [vmem:[%s951 + $0x68] sm:$0xff]
        %v1543 = vld [vmem:[%s951 + $0x70] sm:$0xff]
        %v1544 = vld [vmem:[%s951 + $0x78] sm:$0xff]
        %v1545 = vld [vmem:[%s958] sm:$0x1]
        %v1547 = vperm.slane %v1545, 0
        %1549 = vmatpush.msra.mxu0 %v1544
        %1550 = vmatpush.msra.mxu0 %v1543
        %1551 = vmatpush.msra.mxu0 %v1542
        %1552 = vmatpush.msra.mxu0 %v1541
        %1553 = vmatpush.msra.mxu0 %v1540
        %1554 = vmatpush.msra.mxu0 %v1539
        %1555 = vmatpush.msra.mxu0 %v1538
        %1556 = vmatpush.msra.mxu0 %v1537
        %1557 = vmatpush.msra.mxu0 %v1536
        %1558 = vmatpush.msra.mxu0 %v1535
        %1559 = vmatpush.msra.mxu0 %v1534
        %1560 = vmatpush.msra.mxu0 %v1533
        %1561 = vmatpush.msra.mxu0 %v1532
        %1562 = vmatpush.msra.mxu0 %v1531
        %1563 = vmatpush.msra.mxu0 %v1530
        %1564 = vmatpush.msra.mxu0 %v1529
        %1565 = vmatmul.f32.gmra.mxu0 %v1527
        %v1566 = vpop.f32.mrf.mxu0
        %v1567 = vadd.f32 %v1547, %v1566
        %1568 = vmatmul.f32.gmra.mxu0 %v1528
        %v1569 = vpop.f32.mrf.mxu0
        %v1570 = vadd.f32 %v1547, %v1569
        %1571 = vdwg.mxu0
        %v1572 = vadd.f32 %v1472, %v1567
        %v1573 = vadd.f32 %v1473, %v1570
        %v1574 = vld [vmem:[%s965] sm:$0x1]
        %v1575 = vld [vmem:[%s972] sm:$0x1]
        %v1576 = vsel %vm1063, %v1572, 0.0
        %1577 = vadd.xlane.f32.xlu0 %v1576
        %v1578 = vpop.xlane.xlu0 %1577
        %v1579 = vsel %vm1063, %v1573, 0.0
        %1580 = vadd.xlane.f32.xlu0 %v1579
        %v1581 = vpop.xlane.xlu0 %1580
        %v1582 = vmul.f32 %v1578, %v1425
        %v1583 = vmul.f32 %v1581, %v1425
        %v1584 = vsub.f32 %v1572, %v1582
        %v1585 = vsub.f32 %v1573, %v1583
        %v1586 = vmul.f32 %v1584, %v1584
        %v1587 = vmul.f32 %v1585, %v1585
        %v1588 = vsel %vm1063, %v1586, 0.0
        %1589 = vadd.xlane.f32.xlu0 %v1588
        %v1590 = vpop.xlane.xlu0 %1589
        %v1591 = vsel %vm1063, %v1587, 0.0
        %1592 = vadd.xlane.f32.xlu0 %v1591
        %v1593 = vpop.xlane.xlu0 %1592
        %v1594 = vmul.f32 %v1590, %v1425
        %v1595 = vmul.f32 %v1593, %v1425
        %v1596 = vadd.f32 %v1594, 1e-12
        %v1597 = vadd.f32 %v1595, 1e-12
        %v1598 = vrsqrt.pop %v1596
        %v1599 = vmul.f32 %v1598, %v1596
        %v1600 = vmul.f32 %v1599, %v1598
        %v1601 = vmul.f32 0.5, %v1600
        %v1602 = vsub.f32 1.5, %v1601
        %v1603 = vmul.f32 %v1598, %v1602
        %vm1604 = vweird.f32 %v1596
        %vm1605 = vweird.f32 %v1598
        %vm1606 = vmor %vm1604, %vm1605
        %v1607 = vsel %vm1606, %v1598, %v1603
        %v1608 = vrsqrt.pop %v1597
        %v1609 = vmul.f32 %v1608, %v1597
        %v1610 = vmul.f32 %v1609, %v1608
        %v1611 = vmul.f32 0.5, %v1610
        %v1612 = vsub.f32 1.5, %v1611
        %v1613 = vmul.f32 %v1608, %v1612
        %vm1614 = vweird.f32 %v1597
        %vm1615 = vweird.f32 %v1608
        %vm1616 = vmor %vm1614, %vm1615
        %v1617 = vsel %vm1616, %v1608, %v1613
        %v1618 = vmul.f32 %v1584, %v1607
        %v1619 = vmul.f32 %v1585, %v1617
        %v1621 = vperm.slane %v1574, 0
        %v1623 = vmul.f32 %v1618, %v1621
        %v1624 = vmul.f32 %v1619, %v1621
        %v1626 = vperm.slane %v1575, 0
        %v1628 = vadd.f32 %v1623, %v1626
        %v1629 = vadd.f32 %v1624, %v1626
        %1630 = vst.msk [vmem:[#allocation2] sm:$0xff] %vm1063, %v1628
        %1631 = vst.msk [vmem:[#allocation2 + $0x8] sm:$0xff] %vm1063, %v1629
        %p1632 = scmp.eq.s32.totalorder %s36, 1
        // Predicated region
        $region93: #{_forward_impl.1} parent=87 // pred_check
          %p1633 = pneg %p1632
        $region94: #{_forward_impl.1} parent=87 // pred_check_branch
          %1635 = sbr.rel (%p1633) target = $region96
        $region95: #{_forward_impl.1} parent=87 // pred_region
          %v1636 = vlaneseq
          %v1637 = vshrl.u32 %v1636, 7
          %v1638 = vlaneseq
          %v1639 = vand.u32 %v1638, 127
          %v1640 = vmul.u32 %v1637, 8
          %vm1641 = vcmp.eq.s32.totalorder %v1639, %v1640
          %v1642 = vsel %vm1641, 1, 0
          %v1643 = vcvt.s32.f32 %v1642
          %v1645 = vsel %vm1096, %v1643, 0
          %1647 = vmatpush.msra.mxu0 0.0
          %1648 = vmatpush.msra.mxu0 0.0
          %1649 = vmatpush.msra.mxu0 0.0
          %1650 = vmatpush.msra.mxu0 0.0
          %1651 = vmatpush.msra.mxu0 0.0
          %1652 = vmatpush.msra.mxu0 0.0
          %1653 = vmatpush.msra.mxu0 0.0
          %1654 = vmatpush.msra.mxu0 0.0
          %1655 = vmatpush.msra.mxu0 0.0
          %1656 = vmatpush.msra.mxu0 0.0
          %1657 = vmatpush.msra.mxu0 0.0
          %1658 = vmatpush.msra.mxu0 0.0
          %1659 = vmatpush.msra.mxu0 0.0
          %1660 = vmatpush.msra.mxu0 0.0
          %1661 = vmatpush.msra.mxu0 %v1629
          %1662 = vmatpush.msra.mxu0 %v1628
          %1663 = vmatmul.f32.gmra.mxu0 %v1645
          %v1664 = vpop.f32.mrf.mxu0
          %v1665 = vadd.f32 0.0, %v1664
          %1666 = vdwg.mxu0
          %v1667 = vld [vmem:[%s977] sm:$0xff]
          %v1668 = vld [vmem:[%s977 + $0x8] sm:$0xff]
          %v1669 = vld [vmem:[%s977 + $0x10] sm:$0xff]
          %v1670 = vld [vmem:[%s977 + $0x18] sm:$0xff]
          %v1671 = vld [vmem:[%s980] sm:$0x1]
          %v1673 = vperm.slane %v1671, 0
          %v1676 = vsel %vm1063, %v1665, 0
          %1678 = vmatpush.msra.mxu0 0.0
          %1679 = vmatpush.msra.mxu0 0.0
          %1680 = vmatpush.msra.mxu0 0.0
          %1681 = vmatpush.msra.mxu0 0.0
          %1682 = vmatpush.msra.mxu0 0.0
          %1683 = vmatpush.msra.mxu0 0.0
          %1684 = vmatpush.msra.mxu0 0.0
          %1685 = vmatpush.msra.mxu0 0.0
          %1686 = vmatpush.msra.mxu0 0.0
          %1687 = vmatpush.msra.mxu0 0.0
          %1688 = vmatpush.msra.mxu0 0.0
          %1689 = vmatpush.msra.mxu0 0.0
          %1690 = vmatpush.msra.mxu0 %v1670
          %1691 = vmatpush.msra.mxu0 %v1669
          %1692 = vmatpush.msra.mxu0 %v1668
          %1693 = vmatpush.msra.mxu0 %v1667
          %1694 = vmatmul.f32.gmra.mxu0 %v1676
          %v1695 = vpop.f32.mrf.mxu0
          %v1696 = vadd.f32 %v1673, %v1695
          %1697 = vdwg.mxu0
          %v1698 = vtanh.pop %v1696
          %vm1699 = vcmask 254976
          %1700 = vst.msk [vmem:[%s869] sm:$0x3] %vm1699, %v1698
        $region96: #{_forward_impl.1} parent=87 // pred_fallthru
          _
        %s1701 = sand.u32 %s517, 1
        %s1702 = scalar_lea.sflag [#allocation5], %s1701
        %s1703 = sand.u32 %s517, 1
        %s1704 = smul.addr %s1703, 2
        %s1705 = scalar_lea.vmem [#allocation4], %s1704
        // Predicated region
        $region97: #{_forward_impl.1} parent=87 // pred_check
          %p1706 = pneg %p527
        $region98: #{_forward_impl.1} parent=87 // pred_check_branch
          %1708 = sbr.rel (%p1706) target = $region100
        $region99: #{_forward_impl.1} parent=87 // pred_region
          %1710 = vsyncadd %s1702, 0
          %s1711 = smul.addr %s35, 2
          %s1712 = scalar_lea.hbm %s17, %s1711
          %s1714 = sshll.u32 %s1705, 4
          %s1715 = int_to_ptr.vmem [resolvable:$true] %s1714
          %s1716 = sshll.u32 %s1712, 4
          %s1717 = int_to_ptr.hbm [resolvable:$true] %s1716
          %1719 = dma.vmem_to_hbm [thread:$0]  %s1715, 32, %s1717, %s1702
        $region100: #{_forward_impl.1} parent=87 // pred_fallthru
          _
      $region88: #{_forward_impl.1} parent=5 // pred_fallthru
        _
      %p1720 = scmp.le.s32.totalorder 2, %s26
      // Predicated region
      $region101: #{_forward_impl.1} parent=5 // pred_check
        %p1721 = pneg %p1720
      $region102: #{_forward_impl.1} parent=5 // pred_check_branch
        %1723 = sbr.rel (%p1721) target = $region104
      $region103: #{_forward_impl.1} parent=5 // pred_region
        %s1724 = ssub.s32 %s26, 2
        // Predicated region
        $region105: #{_forward_impl.1} parent=103 // pred_check
          %p1725 = pneg %p533
        $region106: #{_forward_impl.1} parent=103 // pred_check_branch
          %1727 = sbr.rel (%p1725) target = $region108
        $region107: #{_forward_impl.1} parent=103 // pred_region
          %s1728 = sand.u32 %s518, 1
          %s1729 = scalar_lea.sflag [#allocation5], %s1728
          %s1730 = sand.u32 %s518, 1
          %s1731 = smul.addr %s1730, 2
          %s1732 = scalar_lea.vmem [#allocation4], %s1731
          %1734 = dma.done %s1729, 32
        $region108: #{_forward_impl.1} parent=103 // pred_fallthru
          _
      $region104: #{_forward_impl.1} parent=5 // pred_fallthru
        _
    $region6: #{_forward_impl.1} parent=1 // loop_footer
      %s30 = sadd.s32 1, %s26
    $region7: #{_forward_impl.1} parent=1 // loop_footer_branch
      %25 = sbr.rel target = $region3
    $region8: #{_forward_impl.1} parent=1 // loop_exit
      _
    %1735 = vsyncpa [#allocation5], 1
    %s1736 = scalar_lea.sflag [#allocation5], 1
    %1737 = vsyncpa %s1736, 1

</llo_original>
